<compile_context>
chip_gen: v7x
topology: tpu7x:2x2x1
jax: 0.10.0
libtpu: 0.0.40
codegen_flags: <defaults>
</compile_context>

<pallas_src>
import functools
import math

import jax
import jax.numpy as jnp
from jax.experimental import pallas as pl
from jax.experimental.pallas import tpu as pltpu

_BN_EPS = 1e-5
_PAD_ROWS = 8          # sublane-aligned zero border inside the conv scratch


def _encoder_block_kernel(x_ref, w1_ref, w2_ref, o_ref, xp_ref, acc_ref, *,
                          n_batch, length, pad, eps):
    """Whole EncoderBlock, VMEM resident.

    x_ref  : (N*L, C) f32   channels-last input rows (batch-major)
    w1_ref : (3, C, C) bf16 conv1 weights, laid out (tap, Cin, Cout)
    w2_ref : (3, C, C) bf16 conv2 weights
    o_ref  : (N*L, C) f32   output rows
    xp_ref : (L + 2*pad, C) bf16 scratch: one sample, zero-padded along length
    acc_ref: (N*L, C) f32   scratch: pre-BN conv output (reused for both convs)
    """
    L = length
    C = x_ref.shape[1]

    def conv3(src_rows, w_ref):
        # Implicit GEMM: accumulate the 3 taps of the length-3 conv on the MXU.
        w_taps = [w_ref[t] for t in range(3)]           # (C, C) bf16, hoisted
        xp_ref[...] = jnp.zeros_like(xp_ref)            # zero borders once
        for n in range(n_batch):
            xp_ref[pad:pad + L, :] = src_rows(n)        # bf16 interior rows
            acc = jnp.zeros((L, C), jnp.float32)
            for t in range(3):
                lo = pad - 1 + t                        # tap offset t-1 in length
                acc += jnp.dot(xp_ref[lo:lo + L, :], w_taps[t],
                               preferred_element_type=jnp.float32)
            acc_ref[n * L:(n + 1) * L, :] = acc

    def batchnorm(v):
        # Training-mode batch stats (biased variance), gamma=1, beta=0.
        mean = jnp.mean(v, axis=0, keepdims=True)
        var = jnp.mean(jnp.square(v - mean), axis=0, keepdims=True)
        return (v - mean) * jax.lax.rsqrt(var + eps)

    # conv1 -> bn1 -> relu
    conv3(lambda n: x_ref[n * L:(n + 1) * L, :].astype(xp_ref.dtype), w1_ref)
    h = jnp.maximum(batchnorm(acc_ref[...]), 0.0)       # (N*L, C) f32

    # conv2 -> bn2
    h_bf = h.astype(xp_ref.dtype)                       # cast once for the MXU
    conv3(lambda n: h_bf[n * L:(n + 1) * L, :], w2_ref)
    y = batchnorm(acc_ref[...])

    # residual add (identity path, exact f32) + final relu
    o_ref[...] = jnp.maximum(y + x_ref[...], 0.0)


def encoder_block_forward(x_ncl, conv1_w, conv2_w, *, eps=_BN_EPS):
    """EncoderBlock forward.

    x_ncl   : (N, C, L) float32, torch Conv1d layout.
    conv*_w : (C, C, 3) float32 torch Conv1d weights (out, in, k);
              kernel_size=3, stride=1, padding=1, bias=False.
    Returns (N, C, L) float32.
    """
    N, C, L = x_ncl.shape
    M = N * L
    # torch NCL -> channels-last rows (metadata transpose/reshape, outside kernel)
    x_rows = jnp.transpose(x_ncl, (0, 2, 1)).reshape(M, C).astype(jnp.float32)
    # (Cout, Cin, k) -> (k, Cin, Cout); cast to bf16 once for the MXU
    w1 = jnp.transpose(conv1_w, (2, 1, 0)).astype(jnp.bfloat16)
    w2 = jnp.transpose(conv2_w, (2, 1, 0)).astype(jnp.bfloat16)

    kernel = functools.partial(_encoder_block_kernel,
                               n_batch=N, length=L, pad=_PAD_ROWS, eps=eps)
    out_rows = pl.pallas_call(
        kernel,
        out_shape=jax.ShapeDtypeStruct((M, C), jnp.float32),
        grid_spec=pltpu.PrefetchScalarGridSpec(
            num_scalar_prefetch=0,
            grid=(1,),
            in_specs=[pl.BlockSpec((M, C), lambda i: (0, 0)),
                      pl.BlockSpec((3, C, C), lambda i: (0, 0, 0)),
                      pl.BlockSpec((3, C, C), lambda i: (0, 0, 0))],
            out_specs=pl.BlockSpec((M, C), lambda i: (0, 0)),
            scratch_shapes=[pltpu.VMEM((L + 2 * _PAD_ROWS, C), jnp.bfloat16),
                            pltpu.VMEM((M, C), jnp.float32)]),
        compiler_params=pltpu.CompilerParams(
            dimension_semantics=("arbitrary",)),
    )(x_rows, w1, w2)
    return jnp.transpose(out_rows.reshape(N, L, C), (0, 2, 1))


# ---------------- pure-JAX reference (for numeric sanity check) ---------------
def _reference_forward(x_ncl, conv1_w, conv2_w, eps=_BN_EPS):
    def conv(z, w):                                # z: (N,C,L), w: (Cout,Cin,3)
        Lz = z.shape[2]
        zp = jnp.pad(z, ((0, 0), (0, 0), (1, 1)))
        taps = jnp.stack([zp[:, :, t:t + Lz] for t in range(3)], axis=-1)
        return jnp.einsum("nclt,oct->nol", taps, w)

    def bn(y):
        mean = jnp.mean(y, axis=(0, 2), keepdims=True)
        var = jnp.mean(jnp.square(y - mean), axis=(0, 2), keepdims=True)
        return (y - mean) * jax.lax.rsqrt(var + eps)

    out = jax.nn.relu(bn(conv(x_ncl, conv1_w)))
    out = bn(conv(out, conv2_w))
    return jax.nn.relu(out + x_ncl)


if __name__ == "__main__":
    N, C, L = 2, 64, 64          # batch, channels (inplanes == planes), length
    key = jax.random.PRNGKey(0)
    k1, k2, kx = jax.random.split(key, 3)
    fan_in = 3 * C
    conv1_w = jax.random.normal(k1, (C, C, 3), jnp.float32) / math.sqrt(fan_in)
    conv2_w = jax.random.normal(k2, (C, C, 3), jnp.float32) / math.sqrt(fan_in)
    x = jax.random.normal(kx, (N, C, L), jnp.float32)

    fwd = jax.jit(encoder_block_forward)
    out = fwd(x, conv1_w, conv2_w)
    jax.block_until_ready(out)

    assert out.shape == (N, C, L)
    assert bool(jnp.all(jnp.isfinite(out)))
    assert bool(jnp.all(out >= 0.0))                 # final ReLU

    ref = _reference_forward(x, conv1_w, conv2_w)
    max_err = float(jnp.max(jnp.abs(out - ref)))
    assert max_err < 1e-1, f"max abs err {max_err}"
    print("KERNEL_OK")
</pallas_src>

<mosaic_0001>
module attributes {stable_mosaic.version = 11 : i64} {
  func.func @_encoder_block_kernel(%arg0: i32, %arg1: memref<128x64xf32, #tpu.memory_space<vmem>>, %arg2: memref<3x64x64xbf16, #tpu.memory_space<vmem>>, %arg3: memref<3x64x64xbf16, #tpu.memory_space<vmem>>, %arg4: memref<128x64xf32, #tpu.memory_space<vmem>>, %arg5: memref<80x64xbf16, #tpu.memory_space<vmem>>, %arg6: memref<128x64xf32, #tpu.memory_space<vmem>>) attributes {dimension_semantics = [#tpu.dimension_semantics<arbitrary>], iteration_bounds = array<i64: 1>, scalar_prefetch = 0 : i64, scratch_operands = 2 : i64, tpu.core_type = #tpu.core_type<tc>, window_params = [{pipeline_mode = #tpu.pipeline_mode<synchronous>, transform_indices = @transform_0, window_bounds = array<i64: 128, 64>}, {pipeline_mode = #tpu.pipeline_mode<synchronous>, transform_indices = @transform_1, window_bounds = array<i64: 3, 64, 64>}, {pipeline_mode = #tpu.pipeline_mode<synchronous>, transform_indices = @transform_2, window_bounds = array<i64: 3, 64, 64>}, {pipeline_mode = #tpu.pipeline_mode<synchronous>, transform_indices = @transform_3, window_bounds = array<i64: 128, 64>}]} {
    %c0 = arith.constant 0 : index
    %c0_0 = arith.constant 0 : index
    %c0_1 = arith.constant 0 : index
    %0 = vector.load %arg2[%c0, %c0_0, %c0_1] : memref<3x64x64xbf16, #tpu.memory_space<vmem>>, vector<1x64x64xbf16>
    %1 = vector.shape_cast %0 : vector<1x64x64xbf16> to vector<64x64xbf16>
    %c1 = arith.constant 1 : index
    %c0_2 = arith.constant 0 : index
    %c0_3 = arith.constant 0 : index
    %2 = vector.load %arg2[%c1, %c0_2, %c0_3] : memref<3x64x64xbf16, #tpu.memory_space<vmem>>, vector<1x64x64xbf16>
    %3 = vector.shape_cast %2 : vector<1x64x64xbf16> to vector<64x64xbf16>
    %c2 = arith.constant 2 : index
    %c0_4 = arith.constant 0 : index
    %c0_5 = arith.constant 0 : index
    %4 = vector.load %arg2[%c2, %c0_4, %c0_5] : memref<3x64x64xbf16, #tpu.memory_space<vmem>>, vector<1x64x64xbf16>
    %5 = vector.shape_cast %4 : vector<1x64x64xbf16> to vector<64x64xbf16>
    %cst = arith.constant 0.000000e+00 : bf16
    %6 = vector.broadcast %cst : bf16 to vector<80x64xbf16>
    %c0_6 = arith.constant 0 : index
    %c0_7 = arith.constant 0 : index
    %7 = vector.load %arg5[%c0_6, %c0_7] : memref<80x64xbf16, #tpu.memory_space<vmem>>, vector<80x64xbf16>
    tpu.vector_store %arg5[%c0_6, %c0_7], %6 {strides = array<i32>} : memref<80x64xbf16, #tpu.memory_space<vmem>>, vector<80x64xbf16>,
    %c0_8 = arith.constant 0 : index
    %c0_9 = arith.constant 0 : index
    %8 = vector.load %arg1[%c0_8, %c0_9] : memref<128x64xf32, #tpu.memory_space<vmem>>, vector<64x64xf32>
    %9 = arith.truncf %8 : vector<64x64xf32> to vector<64x64xbf16>
    %c8 = arith.constant 8 : index
    %c0_10 = arith.constant 0 : index
    %10 = vector.load %arg5[%c8, %c0_10] : memref<80x64xbf16, #tpu.memory_space<vmem>>, vector<64x64xbf16>
    tpu.vector_store %arg5[%c8, %c0_10], %9 {strides = array<i32>} : memref<80x64xbf16, #tpu.memory_space<vmem>>, vector<64x64xbf16>,
    %cst_11 = arith.constant 0.000000e+00 : f32
    %11 = vector.broadcast %cst_11 : f32 to vector<64x64xf32>
    %c7 = arith.constant 7 : index
    %c0_12 = arith.constant 0 : index
    %12 = vector.load %arg5[%c7, %c0_12] : memref<80x64xbf16, #tpu.memory_space<vmem>>, vector<64x64xbf16>
    %cst_13 = arith.constant dense<0.000000e+00> : vector<64x64xf32>
    %13 = tpu.matmul %12, %1, %cst_13 {dimension_numbers = #tpu.dot_dimension_numbers<[1], [0], [0], [1], [0, 0, 1, 1], [], []>} : vector<64x64xbf16>, vector<64x64xbf16>, vector<64x64xf32> -> vector<64x64xf32>
    %14 = arith.addf %11, %13 : vector<64x64xf32>
    %c8_14 = arith.constant 8 : index
    %c0_15 = arith.constant 0 : index
    %15 = vector.load %arg5[%c8_14, %c0_15] : memref<80x64xbf16, #tpu.memory_space<vmem>>, vector<64x64xbf16>
    %cst_16 = arith.constant dense<0.000000e+00> : vector<64x64xf32>
    %16 = tpu.matmul %15, %3, %cst_16 {dimension_numbers = #tpu.dot_dimension_numbers<[1], [0], [0], [1], [0, 0, 1, 1], [], []>} : vector<64x64xbf16>, vector<64x64xbf16>, vector<64x64xf32> -> vector<64x64xf32>
    %17 = arith.addf %14, %16 : vector<64x64xf32>
    %c9 = arith.constant 9 : index
    %c0_17 = arith.constant 0 : index
    %18 = vector.load %arg5[%c9, %c0_17] : memref<80x64xbf16, #tpu.memory_space<vmem>>, vector<64x64xbf16>
    %cst_18 = arith.constant dense<0.000000e+00> : vector<64x64xf32>
    %19 = tpu.matmul %18, %5, %cst_18 {dimension_numbers = #tpu.dot_dimension_numbers<[1], [0], [0], [1], [0, 0, 1, 1], [], []>} : vector<64x64xbf16>, vector<64x64xbf16>, vector<64x64xf32> -> vector<64x64xf32>
    %20 = arith.addf %17, %19 : vector<64x64xf32>
    %c0_19 = arith.constant 0 : index
    %c0_20 = arith.constant 0 : index
    %21 = vector.load %arg6[%c0_19, %c0_20] : memref<128x64xf32, #tpu.memory_space<vmem>>, vector<64x64xf32>
    tpu.vector_store %arg6[%c0_19, %c0_20], %20 {strides = array<i32>} : memref<128x64xf32, #tpu.memory_space<vmem>>, vector<64x64xf32>,
    %c64 = arith.constant 64 : index
    %c0_21 = arith.constant 0 : index
    %22 = vector.load %arg1[%c64, %c0_21] : memref<128x64xf32, #tpu.memory_space<vmem>>, vector<64x64xf32>
    %23 = arith.truncf %22 : vector<64x64xf32> to vector<64x64xbf16>
    %c8_22 = arith.constant 8 : index
    %c0_23 = arith.constant 0 : index
    %24 = vector.load %arg5[%c8_22, %c0_23] : memref<80x64xbf16, #tpu.memory_space<vmem>>, vector<64x64xbf16>
    tpu.vector_store %arg5[%c8_22, %c0_23], %23 {strides = array<i32>} : memref<80x64xbf16, #tpu.memory_space<vmem>>, vector<64x64xbf16>,
    %cst_24 = arith.constant 0.000000e+00 : f32
    %25 = vector.broadcast %cst_24 : f32 to vector<64x64xf32>
    %c7_25 = arith.constant 7 : index
    %c0_26 = arith.constant 0 : index
    %26 = vector.load %arg5[%c7_25, %c0_26] : memref<80x64xbf16, #tpu.memory_space<vmem>>, vector<64x64xbf16>
    %cst_27 = arith.constant dense<0.000000e+00> : vector<64x64xf32>
    %27 = tpu.matmul %26, %1, %cst_27 {dimension_numbers = #tpu.dot_dimension_numbers<[1], [0], [0], [1], [0, 0, 1, 1], [], []>} : vector<64x64xbf16>, vector<64x64xbf16>, vector<64x64xf32> -> vector<64x64xf32>
    %28 = arith.addf %25, %27 : vector<64x64xf32>
    %c8_28 = arith.constant 8 : index
    %c0_29 = arith.constant 0 : index
    %29 = vector.load %arg5[%c8_28, %c0_29] : memref<80x64xbf16, #tpu.memory_space<vmem>>, vector<64x64xbf16>
    %cst_30 = arith.constant dense<0.000000e+00> : vector<64x64xf32>
    %30 = tpu.matmul %29, %3, %cst_30 {dimension_numbers = #tpu.dot_dimension_numbers<[1], [0], [0], [1], [0, 0, 1, 1], [], []>} : vector<64x64xbf16>, vector<64x64xbf16>, vector<64x64xf32> -> vector<64x64xf32>
    %31 = arith.addf %28, %30 : vector<64x64xf32>
    %c9_31 = arith.constant 9 : index
    %c0_32 = arith.constant 0 : index
    %32 = vector.load %arg5[%c9_31, %c0_32] : memref<80x64xbf16, #tpu.memory_space<vmem>>, vector<64x64xbf16>
    %cst_33 = arith.constant dense<0.000000e+00> : vector<64x64xf32>
    %33 = tpu.matmul %32, %5, %cst_33 {dimension_numbers = #tpu.dot_dimension_numbers<[1], [0], [0], [1], [0, 0, 1, 1], [], []>} : vector<64x64xbf16>, vector<64x64xbf16>, vector<64x64xf32> -> vector<64x64xf32>
    %34 = arith.addf %31, %33 : vector<64x64xf32>
    %c64_34 = arith.constant 64 : index
    %c0_35 = arith.constant 0 : index
    %35 = vector.load %arg6[%c64_34, %c0_35] : memref<128x64xf32, #tpu.memory_space<vmem>>, vector<64x64xf32>
    tpu.vector_store %arg6[%c64_34, %c0_35], %34 {strides = array<i32>} : memref<128x64xf32, #tpu.memory_space<vmem>>, vector<64x64xf32>,
    %c0_36 = arith.constant 0 : index
    %c0_37 = arith.constant 0 : index
    %36 = vector.load %arg6[%c0_36, %c0_37] : memref<128x64xf32, #tpu.memory_space<vmem>>, vector<128x64xf32>
    %cst_38 = arith.constant dense<0.000000e+00> : vector<64xf32>
    %37 = vector.multi_reduction <add>, %36, %cst_38 [0] : vector<128x64xf32> to vector<64xf32>
    %38 = vector.shape_cast %37 : vector<64xf32> to vector<1x64xf32>
    %cst_39 = arith.constant 1.280000e+02 : f32
    %39 = vector.broadcast %cst_39 : f32 to vector<1x64xf32>
    %40 = arith.divf %38, %39 : vector<1x64xf32>
    %41 = vector.broadcast %40 : vector<1x64xf32> to vector<128x64xf32>
    %42 = arith.subf %36, %41 : vector<128x64xf32>
    %43 = arith.mulf %42, %42 : vector<128x64xf32>
    %cst_40 = arith.constant dense<0.000000e+00> : vector<64xf32>
    %44 = vector.multi_reduction <add>, %43, %cst_40 [0] : vector<128x64xf32> to vector<64xf32>
    %45 = vector.shape_cast %44 : vector<64xf32> to vector<1x64xf32>
    %cst_41 = arith.constant 1.280000e+02 : f32
    %46 = vector.broadcast %cst_41 : f32 to vector<1x64xf32>
    %47 = arith.divf %45, %46 : vector<1x64xf32>
    %48 = vector.broadcast %40 : vector<1x64xf32> to vector<128x64xf32>
    %49 = arith.subf %36, %48 : vector<128x64xf32>
    %cst_42 = arith.constant 9.99999974E-6 : f32
    %50 = vector.broadcast %cst_42 : f32 to vector<1x64xf32>
    %51 = arith.addf %47, %50 : vector<1x64xf32>
    %52 = math.rsqrt %51 : vector<1x64xf32>
    %53 = vector.broadcast %52 : vector<1x64xf32> to vector<128x64xf32>
    %54 = arith.mulf %49, %53 : vector<128x64xf32>
    %cst_43 = arith.constant 0.000000e+00 : f32
    %55 = vector.broadcast %cst_43 : f32 to vector<128x64xf32>
    %56 = arith.maximumf %54, %55 : vector<128x64xf32>
    %57 = arith.truncf %56 : vector<128x64xf32> to vector<128x64xbf16>
    %c0_44 = arith.constant 0 : index
    %c0_45 = arith.constant 0 : index
    %c0_46 = arith.constant 0 : index
    %58 = vector.load %arg3[%c0_44, %c0_45, %c0_46] : memref<3x64x64xbf16, #tpu.memory_space<vmem>>, vector<1x64x64xbf16>
    %59 = vector.shape_cast %58 : vector<1x64x64xbf16> to vector<64x64xbf16>
    %c1_47 = arith.constant 1 : index
    %c0_48 = arith.constant 0 : index
    %c0_49 = arith.constant 0 : index
    %60 = vector.load %arg3[%c1_47, %c0_48, %c0_49] : memref<3x64x64xbf16, #tpu.memory_space<vmem>>, vector<1x64x64xbf16>
    %61 = vector.shape_cast %60 : vector<1x64x64xbf16> to vector<64x64xbf16>
    %c2_50 = arith.constant 2 : index
    %c0_51 = arith.constant 0 : index
    %c0_52 = arith.constant 0 : index
    %62 = vector.load %arg3[%c2_50, %c0_51, %c0_52] : memref<3x64x64xbf16, #tpu.memory_space<vmem>>, vector<1x64x64xbf16>
    %63 = vector.shape_cast %62 : vector<1x64x64xbf16> to vector<64x64xbf16>
    %cst_53 = arith.constant 0.000000e+00 : bf16
    %64 = vector.broadcast %cst_53 : bf16 to vector<80x64xbf16>
    %c0_54 = arith.constant 0 : index
    %c0_55 = arith.constant 0 : index
    %65 = vector.load %arg5[%c0_54, %c0_55] : memref<80x64xbf16, #tpu.memory_space<vmem>>, vector<80x64xbf16>
    tpu.vector_store %arg5[%c0_54, %c0_55], %64 {strides = array<i32>} : memref<80x64xbf16, #tpu.memory_space<vmem>>, vector<80x64xbf16>,
    %66 = vector.extract_strided_slice %57 {offsets = [0, 0], sizes = [64, 64], strides = [1, 1]} : vector<128x64xbf16> to vector<64x64xbf16>
    %c8_56 = arith.constant 8 : index
    %c0_57 = arith.constant 0 : index
    %67 = vector.load %arg5[%c8_56, %c0_57] : memref<80x64xbf16, #tpu.memory_space<vmem>>, vector<64x64xbf16>
    tpu.vector_store %arg5[%c8_56, %c0_57], %66 {strides = array<i32>} : memref<80x64xbf16, #tpu.memory_space<vmem>>, vector<64x64xbf16>,
    %cst_58 = arith.constant 0.000000e+00 : f32
    %68 = vector.broadcast %cst_58 : f32 to vector<64x64xf32>
    %c7_59 = arith.constant 7 : index
    %c0_60 = arith.constant 0 : index
    %69 = vector.load %arg5[%c7_59, %c0_60] : memref<80x64xbf16, #tpu.memory_space<vmem>>, vector<64x64xbf16>
    %cst_61 = arith.constant dense<0.000000e+00> : vector<64x64xf32>
    %70 = tpu.matmul %69, %59, %cst_61 {dimension_numbers = #tpu.dot_dimension_numbers<[1], [0], [0], [1], [0, 0, 1, 1], [], []>} : vector<64x64xbf16>, vector<64x64xbf16>, vector<64x64xf32> -> vector<64x64xf32>
    %71 = arith.addf %68, %70 : vector<64x64xf32>
    %c8_62 = arith.constant 8 : index
    %c0_63 = arith.constant 0 : index
    %72 = vector.load %arg5[%c8_62, %c0_63] : memref<80x64xbf16, #tpu.memory_space<vmem>>, vector<64x64xbf16>
    %cst_64 = arith.constant dense<0.000000e+00> : vector<64x64xf32>
    %73 = tpu.matmul %72, %61, %cst_64 {dimension_numbers = #tpu.dot_dimension_numbers<[1], [0], [0], [1], [0, 0, 1, 1], [], []>} : vector<64x64xbf16>, vector<64x64xbf16>, vector<64x64xf32> -> vector<64x64xf32>
    %74 = arith.addf %71, %73 : vector<64x64xf32>
    %c9_65 = arith.constant 9 : index
    %c0_66 = arith.constant 0 : index
    %75 = vector.load %arg5[%c9_65, %c0_66] : memref<80x64xbf16, #tpu.memory_space<vmem>>, vector<64x64xbf16>
    %cst_67 = arith.constant dense<0.000000e+00> : vector<64x64xf32>
    %76 = tpu.matmul %75, %63, %cst_67 {dimension_numbers = #tpu.dot_dimension_numbers<[1], [0], [0], [1], [0, 0, 1, 1], [], []>} : vector<64x64xbf16>, vector<64x64xbf16>, vector<64x64xf32> -> vector<64x64xf32>
    %77 = arith.addf %74, %76 : vector<64x64xf32>
    %c0_68 = arith.constant 0 : index
    %c0_69 = arith.constant 0 : index
    %78 = vector.load %arg6[%c0_68, %c0_69] : memref<128x64xf32, #tpu.memory_space<vmem>>, vector<64x64xf32>
    tpu.vector_store %arg6[%c0_68, %c0_69], %77 {strides = array<i32>} : memref<128x64xf32, #tpu.memory_space<vmem>>, vector<64x64xf32>,
    %79 = vector.extract_strided_slice %57 {offsets = [64, 0], sizes = [64, 64], strides = [1, 1]} : vector<128x64xbf16> to vector<64x64xbf16>
    %c8_70 = arith.constant 8 : index
    %c0_71 = arith.constant 0 : index
    %80 = vector.load %arg5[%c8_70, %c0_71] : memref<80x64xbf16, #tpu.memory_space<vmem>>, vector<64x64xbf16>
    tpu.vector_store %arg5[%c8_70, %c0_71], %79 {strides = array<i32>} : memref<80x64xbf16, #tpu.memory_space<vmem>>, vector<64x64xbf16>,
    %cst_72 = arith.constant 0.000000e+00 : f32
    %81 = vector.broadcast %cst_72 : f32 to vector<64x64xf32>
    %c7_73 = arith.constant 7 : index
    %c0_74 = arith.constant 0 : index
    %82 = vector.load %arg5[%c7_73, %c0_74] : memref<80x64xbf16, #tpu.memory_space<vmem>>, vector<64x64xbf16>
    %cst_75 = arith.constant dense<0.000000e+00> : vector<64x64xf32>
    %83 = tpu.matmul %82, %59, %cst_75 {dimension_numbers = #tpu.dot_dimension_numbers<[1], [0], [0], [1], [0, 0, 1, 1], [], []>} : vector<64x64xbf16>, vector<64x64xbf16>, vector<64x64xf32> -> vector<64x64xf32>
    %84 = arith.addf %81, %83 : vector<64x64xf32>
    %c8_76 = arith.constant 8 : index
    %c0_77 = arith.constant 0 : index
    %85 = vector.load %arg5[%c8_76, %c0_77] : memref<80x64xbf16, #tpu.memory_space<vmem>>, vector<64x64xbf16>
    %cst_78 = arith.constant dense<0.000000e+00> : vector<64x64xf32>
    %86 = tpu.matmul %85, %61, %cst_78 {dimension_numbers = #tpu.dot_dimension_numbers<[1], [0], [0], [1], [0, 0, 1, 1], [], []>} : vector<64x64xbf16>, vector<64x64xbf16>, vector<64x64xf32> -> vector<64x64xf32>
    %87 = arith.addf %84, %86 : vector<64x64xf32>
    %c9_79 = arith.constant 9 : index
    %c0_80 = arith.constant 0 : index
    %88 = vector.load %arg5[%c9_79, %c0_80] : memref<80x64xbf16, #tpu.memory_space<vmem>>, vector<64x64xbf16>
    %cst_81 = arith.constant dense<0.000000e+00> : vector<64x64xf32>
    %89 = tpu.matmul %88, %63, %cst_81 {dimension_numbers = #tpu.dot_dimension_numbers<[1], [0], [0], [1], [0, 0, 1, 1], [], []>} : vector<64x64xbf16>, vector<64x64xbf16>, vector<64x64xf32> -> vector<64x64xf32>
    %90 = arith.addf %87, %89 : vector<64x64xf32>
    %c64_82 = arith.constant 64 : index
    %c0_83 = arith.constant 0 : index
    %91 = vector.load %arg6[%c64_82, %c0_83] : memref<128x64xf32, #tpu.memory_space<vmem>>, vector<64x64xf32>
    tpu.vector_store %arg6[%c64_82, %c0_83], %90 {strides = array<i32>} : memref<128x64xf32, #tpu.memory_space<vmem>>, vector<64x64xf32>,
    %c0_84 = arith.constant 0 : index
    %c0_85 = arith.constant 0 : index
    %92 = vector.load %arg6[%c0_84, %c0_85] : memref<128x64xf32, #tpu.memory_space<vmem>>, vector<128x64xf32>
    %cst_86 = arith.constant dense<0.000000e+00> : vector<64xf32>
    %93 = vector.multi_reduction <add>, %92, %cst_86 [0] : vector<128x64xf32> to vector<64xf32>
    %94 = vector.shape_cast %93 : vector<64xf32> to vector<1x64xf32>
    %cst_87 = arith.constant 1.280000e+02 : f32
    %95 = vector.broadcast %cst_87 : f32 to vector<1x64xf32>
    %96 = arith.divf %94, %95 : vector<1x64xf32>
    %97 = vector.broadcast %96 : vector<1x64xf32> to vector<128x64xf32>
    %98 = arith.subf %92, %97 : vector<128x64xf32>
    %99 = arith.mulf %98, %98 : vector<128x64xf32>
    %cst_88 = arith.constant dense<0.000000e+00> : vector<64xf32>
    %100 = vector.multi_reduction <add>, %99, %cst_88 [0] : vector<128x64xf32> to vector<64xf32>
    %101 = vector.shape_cast %100 : vector<64xf32> to vector<1x64xf32>
    %cst_89 = arith.constant 1.280000e+02 : f32
    %102 = vector.broadcast %cst_89 : f32 to vector<1x64xf32>
    %103 = arith.divf %101, %102 : vector<1x64xf32>
    %104 = vector.broadcast %96 : vector<1x64xf32> to vector<128x64xf32>
    %105 = arith.subf %92, %104 : vector<128x64xf32>
    %cst_90 = arith.constant 9.99999974E-6 : f32
    %106 = vector.broadcast %cst_90 : f32 to vector<1x64xf32>
    %107 = arith.addf %103, %106 : vector<1x64xf32>
    %108 = math.rsqrt %107 : vector<1x64xf32>
    %109 = vector.broadcast %108 : vector<1x64xf32> to vector<128x64xf32>
    %110 = arith.mulf %105, %109 : vector<128x64xf32>
    %c0_91 = arith.constant 0 : index
    %c0_92 = arith.constant 0 : index
    %111 = vector.load %arg1[%c0_91, %c0_92] : memref<128x64xf32, #tpu.memory_space<vmem>>, vector<128x64xf32>
    %112 = arith.addf %110, %111 : vector<128x64xf32>
    %cst_93 = arith.constant 0.000000e+00 : f32
    %113 = vector.broadcast %cst_93 : f32 to vector<128x64xf32>
    %114 = arith.maximumf %112, %113 : vector<128x64xf32>
    %c0_94 = arith.constant 0 : index
    %c0_95 = arith.constant 0 : index
    %115 = vector.load %arg4[%c0_94, %c0_95] : memref<128x64xf32, #tpu.memory_space<vmem>>, vector<128x64xf32>
    tpu.vector_store %arg4[%c0_94, %c0_95], %114 {strides = array<i32>} : memref<128x64xf32, #tpu.memory_space<vmem>>, vector<128x64xf32>,
    return
  }
  func.func @transform_0(%arg0: i32) -> (i32, i32) {
    %c0_i32 = arith.constant 0 : i32
    %c0_i32_0 = arith.constant 0 : i32
    %c0_i32_1 = arith.constant 0 : i32
    return %c0_i32, %c0_i32_0 : i32, i32
  }
  func.func @transform_1(%arg0: i32) -> (i32, i32, i32) {
    %c0_i32 = arith.constant 0 : i32
    %c0_i32_0 = arith.constant 0 : i32
    %c0_i32_1 = arith.constant 0 : i32
    %c0_i32_2 = arith.constant 0 : i32
    return %c0_i32, %c0_i32_0, %c0_i32_1 : i32, i32, i32
  }
  func.func @transform_2(%arg0: i32) -> (i32, i32, i32) {
    %c0_i32 = arith.constant 0 : i32
    %c0_i32_0 = arith.constant 0 : i32
    %c0_i32_1 = arith.constant 0 : i32
    %c0_i32_2 = arith.constant 0 : i32
    return %c0_i32, %c0_i32_0, %c0_i32_1 : i32, i32, i32
  }
  func.func @transform_3(%arg0: i32) -> (i32, i32) {
    %c0_i32 = arith.constant 0 : i32
    %c0_i32_0 = arith.constant 0 : i32
    %c0_i32_1 = arith.constant 0 : i32
    return %c0_i32, %c0_i32_0 : i32, i32
  }
}

</mosaic_0001>

<llo_original>
// kernel: encoder_block_forward.1
$region0: #{encoder_block_forward.1}
  #allocation0 [shape = 'u32[]', space=smem, size = 0x4, offset = 0x4, fixed_abs, tag = 'smem constant byte address 0x4 - core index']
  #allocation1 [shape = 'u32[144,128]{1,0:T(1,128)}', space=vmem, size = 0x12000, scoped, tag = 'internal scratch']
  #allocation2 [shape = 'bf16[80,64]{1,0:T(16,128)(2,1)}', space=vmem, size = 0x5000, scoped, tag = 'scratch operand']
  #allocation3 [shape = 'f32[128,64]{1,0:T(8,128)}', space=vmem, size = 0x10000, scoped, tag = 'scratch operand']
  %s0 = inlined_call_operand.vmem [shape: f32[128,64], index: 0, kind: input, shape index: {}]
  %s1 = inlined_call_operand.vmem [shape: bf16[3,64,64], index: 1, kind: input, shape index: {}]
  %s2 = inlined_call_operand.vmem [shape: bf16[3,64,64], index: 2, kind: input, shape index: {}]
  %s3 = inlined_call_operand.vmem [shape: f32[128,64], index: 3, kind: output, shape index: {}]
  %s4 = sld [smem:[#allocation0]]
  $region22: #{encoder_block_forward.1} parent=0
    _
  %s6 = ssub.s32 1, %s4
  %s7 = scalar_select 0, %s6, %s4
  // Predicated region
  $region2: #{encoder_block_forward.1} parent=0 // pred_check
    _
  $region3: #{encoder_block_forward.1} parent=0 // pred_check_branch
    %9 = sbr.rel (0) target = $region5
  $region4: #{encoder_block_forward.1} parent=0 // pred_region
    _
  $region5: #{encoder_block_forward.1} parent=0 // pred_fallthru
    _
  // Predicated region
  $region6: #{encoder_block_forward.1} parent=0 // pred_check
    _
  $region7: #{encoder_block_forward.1} parent=0 // pred_check_branch
    %11 = sbr.rel (0) target = $region9
  $region8: #{encoder_block_forward.1} parent=0 // pred_region
    _
  $region9: #{encoder_block_forward.1} parent=0 // pred_fallthru
    _
  // Predicated region
  $region10: #{encoder_block_forward.1} parent=0 // pred_check
    _
  $region11: #{encoder_block_forward.1} parent=0 // pred_check_branch
    %13 = sbr.rel (0) target = $region13
  $region12: #{encoder_block_forward.1} parent=0 // pred_region
    _
  $region13: #{encoder_block_forward.1} parent=0 // pred_fallthru
    _
  %v15 = vld [vmem:[%s1] sm:$0xf]
  %v16 = vld [vmem:[%s1 + $0x4] sm:$0xf]
  %v17 = vld [vmem:[%s1 + $0x8] sm:$0xf]
  %v18 = vld [vmem:[%s1 + $0xc] sm:$0xf]
  %v19 = vld [vmem:[%s1 + $0x10] sm:$0xf]
  %v20 = vld [vmem:[%s1 + $0x14] sm:$0xf]
  %v21 = vld [vmem:[%s1 + $0x18] sm:$0xf]
  %v22 = vld [vmem:[%s1 + $0x1c] sm:$0xf]
  %s23 = scalar_lea.vmem %s1, 32
  %v24 = vld [vmem:[%s23] sm:$0xf]
  %v25 = vld [vmem:[%s23 + $0x4] sm:$0xf]
  %v26 = vld [vmem:[%s23 + $0x8] sm:$0xf]
  %v27 = vld [vmem:[%s23 + $0xc] sm:$0xf]
  %v28 = vld [vmem:[%s23 + $0x10] sm:$0xf]
  %v29 = vld [vmem:[%s23 + $0x14] sm:$0xf]
  %v30 = vld [vmem:[%s23 + $0x18] sm:$0xf]
  %v31 = vld [vmem:[%s23 + $0x1c] sm:$0xf]
  %s32 = scalar_lea.vmem %s1, 64
  %v33 = vld [vmem:[%s32] sm:$0xf]
  %v34 = vld [vmem:[%s32 + $0x4] sm:$0xf]
  %v35 = vld [vmem:[%s32 + $0x8] sm:$0xf]
  %v36 = vld [vmem:[%s32 + $0xc] sm:$0xf]
  %v37 = vld [vmem:[%s32 + $0x10] sm:$0xf]
  %v38 = vld [vmem:[%s32 + $0x14] sm:$0xf]
  %v39 = vld [vmem:[%s32 + $0x18] sm:$0xf]
  %v40 = vld [vmem:[%s32 + $0x1c] sm:$0xf]
  %vm41 = vcmask 523264
  %42 = vst.msk [vmem:[#allocation2] sm:$0xff] %vm41, 0
  %43 = vst.msk [vmem:[#allocation2 + $0x8] sm:$0xff] %vm41, 0
  %44 = vst.msk [vmem:[#allocation2 + $0x10] sm:$0xff] %vm41, 0
  %45 = vst.msk [vmem:[#allocation2 + $0x18] sm:$0xff] %vm41, 0
  %46 = vst.msk [vmem:[#allocation2 + $0x20] sm:$0xff] %vm41, 0
  %v47 = vld [vmem:[%s0] sm:$0xff]
  %v48 = vld [vmem:[%s0 + $0x8] sm:$0xff]
  %v49 = vld [vmem:[%s0 + $0x10] sm:$0xff]
  %v50 = vld [vmem:[%s0 + $0x18] sm:$0xff]
  %v51 = vld [vmem:[%s0 + $0x20] sm:$0xff]
  %v52 = vld [vmem:[%s0 + $0x28] sm:$0xff]
  %v53 = vld [vmem:[%s0 + $0x30] sm:$0xff]
  %v54 = vld [vmem:[%s0 + $0x38] sm:$0xff]
  %v55 = vpack.c.bf16 %v48, %v47
  %v56 = vpack.c.bf16 %v50, %v49
  %v57 = vpack.c.bf16 %v52, %v51
  %v58 = vpack.c.bf16 %v54, %v53
  %vm63 = vcmask 1043456
  %v64 = vrot.slane %v55, 4
  %v65 = vrot.slane %v56, 4
  %v66 = vsel %vm63, %v64, %v65
  %v67 = vrot.slane %v57, 4
  %v68 = vsel %vm63, %v65, %v67
  %v69 = vrot.slane %v58, 4
  %v70 = vsel %vm63, %v67, %v69
  %vm76 = vcmask 523268
  %77 = vst.msk [vmem:[#allocation2] sm:$0xf0] %vm76, %v64
  %78 = vst.msk [vmem:[#allocation2 + $0x8] sm:$0xff] %vm41, %v66
  %79 = vst.msk [vmem:[#allocation2 + $0x10] sm:$0xff] %vm41, %v68
  %80 = vst.msk [vmem:[#allocation2 + $0x18] sm:$0xff] %vm41, %v70
  %vm81 = vcmask 519168
  %82 = vst.msk [vmem:[#allocation2 + $0x20] sm:$0xf] %vm81, %v69
  %v83 = vld [vmem:[#allocation2] sm:$0xf8]
  %v84 = vld [vmem:[#allocation2 + $0x8] sm:$0xff]
  %v85 = vld [vmem:[#allocation2 + $0x10] sm:$0xff]
  %v86 = vld [vmem:[#allocation2 + $0x18] sm:$0xff]
  %v87 = vld [vmem:[#allocation2 + $0x20] sm:$0xf]
  %v88 = vld [vmem:[#allocation2] sm:$0xf0]
  %v94 = vrot.slane %v88, 4
  %v95 = vrot.slane %v84, 4
  %v96 = vsel %vm63, %v94, %v95
  %v97 = vrot.slane %v85, 4
  %v98 = vsel %vm63, %v95, %v97
  %v99 = vrot.slane %v86, 4
  %v100 = vsel %vm63, %v97, %v99
  %v101 = vrot.slane %v87, 4
  %v102 = vsel %vm63, %v99, %v101
  %v111 = vunpack.c.l.b16 %v24
  %v112 = vunpack.c.l.b16 %v25
  %v113 = vunpack.c.l.b16 %v26
  %v114 = vunpack.c.l.b16 %v27
  %v115 = vunpack.c.l.b16 %v28
  %v116 = vunpack.c.l.b16 %v29
  %v117 = vunpack.c.l.b16 %v30
  %v118 = vunpack.c.l.b16 %v31
  %v119 = vpack.c.b16 %v112, %v111
  %v120 = vpack.c.b16 %v114, %v113
  %v121 = vpack.c.b16 %v116, %v115
  %v122 = vpack.c.b16 %v118, %v117
  %v128 = vsel %vm41, %v96, 0
  %v131 = vsel %vm41, %v98, 0
  %v134 = vsel %vm41, %v100, 0
  %v137 = vsel %vm41, %v102, 0
  %139 = vmatprep.subr.bf16.mxu0 0
  %140 = vmatpush1.bf16.msra.mxu0 %v119
  %141 = vmatprep.subr.bf16.mxu0 0
  %142 = vmatpush1.bf16.msra.mxu0 %v120
  %143 = vmatprep.subr.bf16.mxu0 0
  %144 = vmatpush1.bf16.msra.mxu0 %v121
  %145 = vmatprep.subr.bf16.mxu0 0
  %146 = vmatpush1.bf16.msra.mxu0 %v122
  %147 = vmatprep.subr.bf16.mxu0 0
  %148 = vmatpush1.bf16.msra.mxu0 0
  %149 = vmatprep.subr.bf16.mxu0 0
  %150 = vmatpush1.bf16.msra.mxu0 0
  %151 = vmatprep.subr.bf16.mxu0 0
  %152 = vmatpush1.bf16.msra.mxu0 0
  %153 = vmatprep.subr.bf16.mxu0 0
  %154 = vmatpush1.bf16.msra.mxu0 0
  %155 = vmatprep.subr.bf16.mxu0 0
  %156 = vmatpush1.bf16.msra.mxu0 0
  %157 = vmatprep.subr.bf16.mxu0 0
  %158 = vmatpush1.bf16.msra.mxu0 0
  %159 = vmatprep.subr.bf16.mxu0 0
  %160 = vmatpush1.bf16.msra.mxu0 0
  %161 = vmatprep.subr.bf16.mxu0 0
  %162 = vmatpush1.bf16.msra.mxu0 0
  %163 = vmatprep.subr.bf16.mxu0 0
  %164 = vmatpush1.bf16.msra.mxu0 0
  %165 = vmatprep.subr.bf16.mxu0 0
  %166 = vmatpush1.bf16.msra.mxu0 0
  %167 = vmatprep.subr.bf16.mxu0 0
  %168 = vmatpush1.bf16.msra.mxu0 0
  %169 = vmatprep.subr.bf16.mxu0 0
  %170 = vmatpush1.bf16.msra.mxu0 0
  %171 = vmatprep.mubr.bf16.mxu0 0
  %172 = vmatmul.mubr.bf16.gmra.mrb[0].mxu0 %v128
  %v173 = vpop.f32.mrb[0].mxu0
  %v174 = vadd.f32 0.0, %v173
  %v175 = vpop.f32.mrb[0].mxu0
  %v176 = vpop.f32.mrb[0].mxu0
  %v177 = vadd.f32 0.0, %v176
  %v178 = vpop.f32.mrb[0].mxu0
  %179 = vmatprep.mubr.bf16.mxu0 0
  %180 = vmatmul.mubr.bf16.gmra.mrb[0].mxu0 %v131
  %v181 = vpop.f32.mrb[0].mxu0
  %v182 = vadd.f32 0.0, %v181
  %v183 = vpop.f32.mrb[0].mxu0
  %v184 = vpop.f32.mrb[0].mxu0
  %v185 = vadd.f32 0.0, %v184
  %v186 = vpop.f32.mrb[0].mxu0
  %187 = vmatprep.mubr.bf16.mxu0 0
  %188 = vmatmul.mubr.bf16.gmra.mrb[0].mxu0 %v134
  %v189 = vpop.f32.mrb[0].mxu0
  %v190 = vadd.f32 0.0, %v189
  %v191 = vpop.f32.mrb[0].mxu0
  %v192 = vpop.f32.mrb[0].mxu0
  %v193 = vadd.f32 0.0, %v192
  %v194 = vpop.f32.mrb[0].mxu0
  %195 = vmatprep.mubr.bf16.mxu0 0
  %196 = vmatmul.mubr.bf16.gmra.mrb[0].mxu0 %v137
  %v197 = vpop.f32.mrb[0].mxu0
  %v198 = vadd.f32 0.0, %v197
  %v199 = vpop.f32.mrb[0].mxu0
  %v200 = vpop.f32.mrb[0].mxu0
  %v201 = vadd.f32 0.0, %v200
  %v202 = vpop.f32.mrb[0].mxu0
  %203 = vdwg.mxu0
  %vm204 = vsmask.f32 4352
  %v206 = vshrl.u32 %v83, 16
  %v208 = vrot.slane %v206, 3
  %v209 = vshll.u32 %v83, 16
  %v211 = vrot.slane %v209, 4
  %v212 = vor.u32 %v208, %v211
  %v214 = vshrl.u32 %v84, 16
  %v216 = vrot.slane %v214, 3
  %v217 = vshll.u32 %v84, 16
  %v219 = vrot.slane %v217, 4
  %v220 = vor.u32 %v216, %v219
  %v221 = vsel %vm204, %v212, %v220
  %v223 = vshrl.u32 %v85, 16
  %v225 = vrot.slane %v223, 3
  %v226 = vshll.u32 %v85, 16
  %v228 = vrot.slane %v226, 4
  %v229 = vor.u32 %v225, %v228
  %v230 = vsel %vm204, %v220, %v229
  %v232 = vshrl.u32 %v86, 16
  %v234 = vrot.slane %v232, 3
  %v235 = vshll.u32 %v86, 16
  %v237 = vrot.slane %v235, 4
  %v238 = vor.u32 %v234, %v237
  %v239 = vsel %vm204, %v229, %v238
  %v241 = vshrl.u32 %v87, 16
  %v243 = vrot.slane %v241, 3
  %v244 = vshll.u32 %v87, 16
  %v246 = vrot.slane %v244, 4
  %v247 = vor.u32 %v243, %v246
  %v248 = vsel %vm204, %v238, %v247
  %v257 = vunpack.c.l.b16 %v15
  %v258 = vunpack.c.l.b16 %v16
  %v259 = vunpack.c.l.b16 %v17
  %v260 = vunpack.c.l.b16 %v18
  %v261 = vunpack.c.l.b16 %v19
  %v262 = vunpack.c.l.b16 %v20
  %v263 = vunpack.c.l.b16 %v21
  %v264 = vunpack.c.l.b16 %v22
  %v265 = vpack.c.b16 %v258, %v257
  %v266 = vpack.c.b16 %v260, %v259
  %v267 = vpack.c.b16 %v262, %v261
  %v268 = vpack.c.b16 %v264, %v263
  %v274 = vsel %vm41, %v221, 0
  %v277 = vsel %vm41, %v230, 0
  %v280 = vsel %vm41, %v239, 0
  %v283 = vsel %vm41, %v248, 0
  %285 = vmatprep.subr.bf16.mxu0 0
  %286 = vmatpush1.bf16.msra.mxu0 %v265
  %287 = vmatprep.subr.bf16.mxu0 0
  %288 = vmatpush1.bf16.msra.mxu0 %v266
  %289 = vmatprep.subr.bf16.mxu0 0
  %290 = vmatpush1.bf16.msra.mxu0 %v267
  %291 = vmatprep.subr.bf16.mxu0 0
  %292 = vmatpush1.bf16.msra.mxu0 %v268
  %293 = vmatprep.subr.bf16.mxu0 0
  %294 = vmatpush1.bf16.msra.mxu0 0
  %295 = vmatprep.subr.bf16.mxu0 0
  %296 = vmatpush1.bf16.msra.mxu0 0
  %297 = vmatprep.subr.bf16.mxu0 0
  %298 = vmatpush1.bf16.msra.mxu0 0
  %299 = vmatprep.subr.bf16.mxu0 0
  %300 = vmatpush1.bf16.msra.mxu0 0
  %301 = vmatprep.subr.bf16.mxu0 0
  %302 = vmatpush1.bf16.msra.mxu0 0
  %303 = vmatprep.subr.bf16.mxu0 0
  %304 = vmatpush1.bf16.msra.mxu0 0
  %305 = vmatprep.subr.bf16.mxu0 0
  %306 = vmatpush1.bf16.msra.mxu0 0
  %307 = vmatprep.subr.bf16.mxu0 0
  %308 = vmatpush1.bf16.msra.mxu0 0
  %309 = vmatprep.subr.bf16.mxu0 0
  %310 = vmatpush1.bf16.msra.mxu0 0
  %311 = vmatprep.subr.bf16.mxu0 0
  %312 = vmatpush1.bf16.msra.mxu0 0
  %313 = vmatprep.subr.bf16.mxu0 0
  %314 = vmatpush1.bf16.msra.mxu0 0
  %315 = vmatprep.subr.bf16.mxu0 0
  %316 = vmatpush1.bf16.msra.mxu0 0
  %317 = vmatprep.mubr.bf16.mxu0 0
  %318 = vmatmul.mubr.bf16.gmra.mrb[0].mxu0 %v274
  %v319 = vpop.f32.mrb[0].mxu0
  %v320 = vadd.f32 %v174, %v319
  %v321 = vpop.f32.mrb[0].mxu0
  %v322 = vpop.f32.mrb[0].mxu0
  %v323 = vadd.f32 %v177, %v322
  %v324 = vpop.f32.mrb[0].mxu0
  %325 = vmatprep.mubr.bf16.mxu0 0
  %326 = vmatmul.mubr.bf16.gmra.mrb[0].mxu0 %v277
  %v327 = vpop.f32.mrb[0].mxu0
  %v328 = vadd.f32 %v182, %v327
  %v329 = vpop.f32.mrb[0].mxu0
  %v330 = vpop.f32.mrb[0].mxu0
  %v331 = vadd.f32 %v185, %v330
  %v332 = vpop.f32.mrb[0].mxu0
  %333 = vmatprep.mubr.bf16.mxu0 0
  %334 = vmatmul.mubr.bf16.gmra.mrb[0].mxu0 %v280
  %v335 = vpop.f32.mrb[0].mxu0
  %v336 = vadd.f32 %v190, %v335
  %v337 = vpop.f32.mrb[0].mxu0
  %v338 = vpop.f32.mrb[0].mxu0
  %v339 = vadd.f32 %v193, %v338
  %v340 = vpop.f32.mrb[0].mxu0
  %341 = vmatprep.mubr.bf16.mxu0 0
  %342 = vmatmul.mubr.bf16.gmra.mrb[0].mxu0 %v283
  %v343 = vpop.f32.mrb[0].mxu0
  %v344 = vadd.f32 %v198, %v343
  %v345 = vpop.f32.mrb[0].mxu0
  %v346 = vpop.f32.mrb[0].mxu0
  %v347 = vadd.f32 %v201, %v346
  %v348 = vpop.f32.mrb[0].mxu0
  %349 = vdwg.mxu0
  %v350 = vld [vmem:[#allocation2 + $0x20] sm:$0x1f]
  %vm351 = vsmask.f32 3328
  %v353 = vshrl.u32 %v88, 16
  %v355 = vrot.slane %v353, 4
  %v356 = vshll.u32 %v88, 16
  %v358 = vrot.slane %v356, 5
  %v359 = vor.u32 %v355, %v358
  %v360 = vrot.slane %v214, 4
  %v361 = vrot.slane %v217, 5
  %v362 = vor.u32 %v360, %v361
  %v363 = vsel %vm351, %v359, %v362
  %v364 = vrot.slane %v223, 4
  %v365 = vrot.slane %v226, 5
  %v366 = vor.u32 %v364, %v365
  %v367 = vsel %vm351, %v362, %v366
  %v368 = vrot.slane %v232, 4
  %v369 = vrot.slane %v235, 5
  %v370 = vor.u32 %v368, %v369
  %v371 = vsel %vm351, %v366, %v370
  %v373 = vshrl.u32 %v350, 16
  %v375 = vrot.slane %v373, 4
  %v376 = vshll.u32 %v350, 16
  %v378 = vrot.slane %v376, 5
  %v379 = vor.u32 %v375, %v378
  %v380 = vsel %vm351, %v370, %v379
  %v389 = vunpack.c.l.b16 %v33
  %v390 = vunpack.c.l.b16 %v34
  %v391 = vunpack.c.l.b16 %v35
  %v392 = vunpack.c.l.b16 %v36
  %v393 = vunpack.c.l.b16 %v37
  %v394 = vunpack.c.l.b16 %v38
  %v395 = vunpack.c.l.b16 %v39
  %v396 = vunpack.c.l.b16 %v40
  %v397 = vpack.c.b16 %v390, %v389
  %v398 = vpack.c.b16 %v392, %v391
  %v399 = vpack.c.b16 %v394, %v393
  %v400 = vpack.c.b16 %v396, %v395
  %v406 = vsel %vm41, %v363, 0
  %v409 = vsel %vm41, %v367, 0
  %v412 = vsel %vm41, %v371, 0
  %v415 = vsel %vm41, %v380, 0
  %417 = vmatprep.subr.bf16.mxu0 0
  %418 = vmatpush1.bf16.msra.mxu0 %v397
  %419 = vmatprep.subr.bf16.mxu0 0
  %420 = vmatpush1.bf16.msra.mxu0 %v398
  %421 = vmatprep.subr.bf16.mxu0 0
  %422 = vmatpush1.bf16.msra.mxu0 %v399
  %423 = vmatprep.subr.bf16.mxu0 0
  %424 = vmatpush1.bf16.msra.mxu0 %v400
  %425 = vmatprep.subr.bf16.mxu0 0
  %426 = vmatpush1.bf16.msra.mxu0 0
  %427 = vmatprep.subr.bf16.mxu0 0
  %428 = vmatpush1.bf16.msra.mxu0 0
  %429 = vmatprep.subr.bf16.mxu0 0
  %430 = vmatpush1.bf16.msra.mxu0 0
  %431 = vmatprep.subr.bf16.mxu0 0
  %432 = vmatpush1.bf16.msra.mxu0 0
  %433 = vmatprep.subr.bf16.mxu0 0
  %434 = vmatpush1.bf16.msra.mxu0 0
  %435 = vmatprep.subr.bf16.mxu0 0
  %436 = vmatpush1.bf16.msra.mxu0 0
  %437 = vmatprep.subr.bf16.mxu0 0
  %438 = vmatpush1.bf16.msra.mxu0 0
  %439 = vmatprep.subr.bf16.mxu0 0
  %440 = vmatpush1.bf16.msra.mxu0 0
  %441 = vmatprep.subr.bf16.mxu0 0
  %442 = vmatpush1.bf16.msra.mxu0 0
  %443 = vmatprep.subr.bf16.mxu0 0
  %444 = vmatpush1.bf16.msra.mxu0 0
  %445 = vmatprep.subr.bf16.mxu0 0
  %446 = vmatpush1.bf16.msra.mxu0 0
  %447 = vmatprep.subr.bf16.mxu0 0
  %448 = vmatpush1.bf16.msra.mxu0 0
  %449 = vmatprep.mubr.bf16.mxu0 0
  %450 = vmatmul.mubr.bf16.gmra.mrb[0].mxu0 %v406
  %v451 = vpop.f32.mrb[0].mxu0
  %v452 = vadd.f32 0.0, %v451
  %v453 = vpop.f32.mrb[0].mxu0
  %v454 = vpop.f32.mrb[0].mxu0
  %v455 = vadd.f32 0.0, %v454
  %v456 = vpop.f32.mrb[0].mxu0
  %457 = vmatprep.mubr.bf16.mxu0 0
  %458 = vmatmul.mubr.bf16.gmra.mrb[0].mxu0 %v409
  %v459 = vpop.f32.mrb[0].mxu0
  %v460 = vadd.f32 0.0, %v459
  %v461 = vpop.f32.mrb[0].mxu0
  %v462 = vpop.f32.mrb[0].mxu0
  %v463 = vadd.f32 0.0, %v462
  %v464 = vpop.f32.mrb[0].mxu0
  %465 = vmatprep.mubr.bf16.mxu0 0
  %466 = vmatmul.mubr.bf16.gmra.mrb[0].mxu0 %v412
  %v467 = vpop.f32.mrb[0].mxu0
  %v468 = vadd.f32 0.0, %v467
  %v469 = vpop.f32.mrb[0].mxu0
  %v470 = vpop.f32.mrb[0].mxu0
  %v471 = vadd.f32 0.0, %v470
  %v472 = vpop.f32.mrb[0].mxu0
  %473 = vmatprep.mubr.bf16.mxu0 0
  %474 = vmatmul.mubr.bf16.gmra.mrb[0].mxu0 %v415
  %v475 = vpop.f32.mrb[0].mxu0
  %v476 = vadd.f32 0.0, %v475
  %v477 = vpop.f32.mrb[0].mxu0
  %v478 = vpop.f32.mrb[0].mxu0
  %v479 = vadd.f32 0.0, %v478
  %v480 = vpop.f32.mrb[0].mxu0
  %481 = vdwg.mxu0
  %v482 = vadd.f32 %v320, %v452
  %v483 = vadd.f32 %v323, %v455
  %v484 = vadd.f32 %v328, %v460
  %v485 = vadd.f32 %v331, %v463
  %v486 = vadd.f32 %v336, %v468
  %v487 = vadd.f32 %v339, %v471
  %v488 = vadd.f32 %v344, %v476
  %v489 = vadd.f32 %v347, %v479
  %490 = vst.msk [vmem:[#allocation3] sm:$0xff] %vm41, %v482
  %491 = vst.msk [vmem:[#allocation3 + $0x8] sm:$0xff] %vm41, %v483
  %492 = vst.msk [vmem:[#allocation3 + $0x10] sm:$0xff] %vm41, %v484
  %493 = vst.msk [vmem:[#allocation3 + $0x18] sm:$0xff] %vm41, %v485
  %494 = vst.msk [vmem:[#allocation3 + $0x20] sm:$0xff] %vm41, %v486
  %495 = vst.msk [vmem:[#allocation3 + $0x28] sm:$0xff] %vm41, %v487
  %496 = vst.msk [vmem:[#allocation3 + $0x30] sm:$0xff] %vm41, %v488
  %497 = vst.msk [vmem:[#allocation3 + $0x38] sm:$0xff] %vm41, %v489
  %v498 = vld [vmem:[%s0 + $0x40] sm:$0xff]
  %v499 = vld [vmem:[%s0 + $0x48] sm:$0xff]
  %v500 = vld [vmem:[%s0 + $0x50] sm:$0xff]
  %v501 = vld [vmem:[%s0 + $0x58] sm:$0xff]
  %v502 = vld [vmem:[%s0 + $0x60] sm:$0xff]
  %v503 = vld [vmem:[%s0 + $0x68] sm:$0xff]
  %v504 = vld [vmem:[%s0 + $0x70] sm:$0xff]
  %v505 = vld [vmem:[%s0 + $0x78] sm:$0xff]
  %v506 = vpack.c.bf16 %v499, %v498
  %v507 = vpack.c.bf16 %v501, %v500
  %v508 = vpack.c.bf16 %v503, %v502
  %v509 = vpack.c.bf16 %v505, %v504
  %v514 = vrot.slane %v506, 4
  %v515 = vrot.slane %v507, 4
  %v516 = vsel %vm63, %v514, %v515
  %v517 = vrot.slane %v508, 4
  %v518 = vsel %vm63, %v515, %v517
  %v519 = vrot.slane %v509, 4
  %v520 = vsel %vm63, %v517, %v519
  %526 = vst.msk [vmem:[#allocation2] sm:$0xf0] %vm76, %v514
  %527 = vst.msk [vmem:[#allocation2 + $0x8] sm:$0xff] %vm41, %v516
  %528 = vst.msk [vmem:[#allocation2 + $0x10] sm:$0xff] %vm41, %v518
  %529 = vst.msk [vmem:[#allocation2 + $0x18] sm:$0xff] %vm41, %v520
  %530 = vst.msk [vmem:[#allocation2 + $0x20] sm:$0xf] %vm81, %v519
  %v531 = vld [vmem:[#allocation2] sm:$0xf8]
  %v532 = vld [vmem:[#allocation2 + $0x8] sm:$0xff]
  %v533 = vld [vmem:[#allocation2 + $0x10] sm:$0xff]
  %v534 = vld [vmem:[#allocation2 + $0x18] sm:$0xff]
  %v535 = vld [vmem:[#allocation2 + $0x20] sm:$0xf]
  %v536 = vld [vmem:[#allocation2] sm:$0xf0]
  %v542 = vrot.slane %v536, 4
  %v543 = vrot.slane %v532, 4
  %v544 = vsel %vm63, %v542, %v543
  %v545 = vrot.slane %v533, 4
  %v546 = vsel %vm63, %v543, %v545
  %v547 = vrot.slane %v534, 4
  %v548 = vsel %vm63, %v545, %v547
  %v549 = vrot.slane %v535, 4
  %v550 = vsel %vm63, %v547, %v549
  %v552 = vsel %vm41, %v544, 0
  %v555 = vsel %vm41, %v546, 0
  %v558 = vsel %vm41, %v548, 0
  %v561 = vsel %vm41, %v550, 0
  %563 = vmatprep.subr.bf16.mxu0 0
  %564 = vmatpush1.bf16.msra.mxu0 %v119
  %565 = vmatprep.subr.bf16.mxu0 0
  %566 = vmatpush1.bf16.msra.mxu0 %v120
  %567 = vmatprep.subr.bf16.mxu0 0
  %568 = vmatpush1.bf16.msra.mxu0 %v121
  %569 = vmatprep.subr.bf16.mxu0 0
  %570 = vmatpush1.bf16.msra.mxu0 %v122
  %571 = vmatprep.subr.bf16.mxu0 0
  %572 = vmatpush1.bf16.msra.mxu0 0
  %573 = vmatprep.subr.bf16.mxu0 0
  %574 = vmatpush1.bf16.msra.mxu0 0
  %575 = vmatprep.subr.bf16.mxu0 0
  %576 = vmatpush1.bf16.msra.mxu0 0
  %577 = vmatprep.subr.bf16.mxu0 0
  %578 = vmatpush1.bf16.msra.mxu0 0
  %579 = vmatprep.subr.bf16.mxu0 0
  %580 = vmatpush1.bf16.msra.mxu0 0
  %581 = vmatprep.subr.bf16.mxu0 0
  %582 = vmatpush1.bf16.msra.mxu0 0
  %583 = vmatprep.subr.bf16.mxu0 0
  %584 = vmatpush1.bf16.msra.mxu0 0
  %585 = vmatprep.subr.bf16.mxu0 0
  %586 = vmatpush1.bf16.msra.mxu0 0
  %587 = vmatprep.subr.bf16.mxu0 0
  %588 = vmatpush1.bf16.msra.mxu0 0
  %589 = vmatprep.subr.bf16.mxu0 0
  %590 = vmatpush1.bf16.msra.mxu0 0
  %591 = vmatprep.subr.bf16.mxu0 0
  %592 = vmatpush1.bf16.msra.mxu0 0
  %593 = vmatprep.subr.bf16.mxu0 0
  %594 = vmatpush1.bf16.msra.mxu0 0
  %595 = vmatprep.mubr.bf16.mxu0 0
  %596 = vmatmul.mubr.bf16.gmra.mrb[0].mxu0 %v552
  %v597 = vpop.f32.mrb[0].mxu0
  %v598 = vadd.f32 0.0, %v597
  %v599 = vpop.f32.mrb[0].mxu0
  %v600 = vpop.f32.mrb[0].mxu0
  %v601 = vadd.f32 0.0, %v600
  %v602 = vpop.f32.mrb[0].mxu0
  %603 = vmatprep.mubr.bf16.mxu0 0
  %604 = vmatmul.mubr.bf16.gmra.mrb[0].mxu0 %v555
  %v605 = vpop.f32.mrb[0].mxu0
  %v606 = vadd.f32 0.0, %v605
  %v607 = vpop.f32.mrb[0].mxu0
  %v608 = vpop.f32.mrb[0].mxu0
  %v609 = vadd.f32 0.0, %v608
  %v610 = vpop.f32.mrb[0].mxu0
  %611 = vmatprep.mubr.bf16.mxu0 0
  %612 = vmatmul.mubr.bf16.gmra.mrb[0].mxu0 %v558
  %v613 = vpop.f32.mrb[0].mxu0
  %v614 = vadd.f32 0.0, %v613
  %v615 = vpop.f32.mrb[0].mxu0
  %v616 = vpop.f32.mrb[0].mxu0
  %v617 = vadd.f32 0.0, %v616
  %v618 = vpop.f32.mrb[0].mxu0
  %619 = vmatprep.mubr.bf16.mxu0 0
  %620 = vmatmul.mubr.bf16.gmra.mrb[0].mxu0 %v561
  %v621 = vpop.f32.mrb[0].mxu0
  %v622 = vadd.f32 0.0, %v621
  %v623 = vpop.f32.mrb[0].mxu0
  %v624 = vpop.f32.mrb[0].mxu0
  %v625 = vadd.f32 0.0, %v624
  %v626 = vpop.f32.mrb[0].mxu0
  %627 = vdwg.mxu0
  %v629 = vshrl.u32 %v531, 16
  %v631 = vrot.slane %v629, 3
  %v632 = vshll.u32 %v531, 16
  %v634 = vrot.slane %v632, 4
  %v635 = vor.u32 %v631, %v634
  %v637 = vshrl.u32 %v532, 16
  %v639 = vrot.slane %v637, 3
  %v640 = vshll.u32 %v532, 16
  %v642 = vrot.slane %v640, 4
  %v643 = vor.u32 %v639, %v642
  %v644 = vsel %vm204, %v635, %v643
  %v646 = vshrl.u32 %v533, 16
  %v648 = vrot.slane %v646, 3
  %v649 = vshll.u32 %v533, 16
  %v651 = vrot.slane %v649, 4
  %v652 = vor.u32 %v648, %v651
  %v653 = vsel %vm204, %v643, %v652
  %v655 = vshrl.u32 %v534, 16
  %v657 = vrot.slane %v655, 3
  %v658 = vshll.u32 %v534, 16
  %v660 = vrot.slane %v658, 4
  %v661 = vor.u32 %v657, %v660
  %v662 = vsel %vm204, %v652, %v661
  %v664 = vshrl.u32 %v535, 16
  %v666 = vrot.slane %v664, 3
  %v667 = vshll.u32 %v535, 16
  %v669 = vrot.slane %v667, 4
  %v670 = vor.u32 %v666, %v669
  %v671 = vsel %vm204, %v661, %v670
  %v673 = vsel %vm41, %v644, 0
  %v676 = vsel %vm41, %v653, 0
  %v679 = vsel %vm41, %v662, 0
  %v682 = vsel %vm41, %v671, 0
  %684 = vmatprep.subr.bf16.mxu0 0
  %685 = vmatpush1.bf16.msra.mxu0 %v265
  %686 = vmatprep.subr.bf16.mxu0 0
  %687 = vmatpush1.bf16.msra.mxu0 %v266
  %688 = vmatprep.subr.bf16.mxu0 0
  %689 = vmatpush1.bf16.msra.mxu0 %v267
  %690 = vmatprep.subr.bf16.mxu0 0
  %691 = vmatpush1.bf16.msra.mxu0 %v268
  %692 = vmatprep.subr.bf16.mxu0 0
  %693 = vmatpush1.bf16.msra.mxu0 0
  %694 = vmatprep.subr.bf16.mxu0 0
  %695 = vmatpush1.bf16.msra.mxu0 0
  %696 = vmatprep.subr.bf16.mxu0 0
  %697 = vmatpush1.bf16.msra.mxu0 0
  %698 = vmatprep.subr.bf16.mxu0 0
  %699 = vmatpush1.bf16.msra.mxu0 0
  %700 = vmatprep.subr.bf16.mxu0 0
  %701 = vmatpush1.bf16.msra.mxu0 0
  %702 = vmatprep.subr.bf16.mxu0 0
  %703 = vmatpush1.bf16.msra.mxu0 0
  %704 = vmatprep.subr.bf16.mxu0 0
  %705 = vmatpush1.bf16.msra.mxu0 0
  %706 = vmatprep.subr.bf16.mxu0 0
  %707 = vmatpush1.bf16.msra.mxu0 0
  %708 = vmatprep.subr.bf16.mxu0 0
  %709 = vmatpush1.bf16.msra.mxu0 0
  %710 = vmatprep.subr.bf16.mxu0 0
  %711 = vmatpush1.bf16.msra.mxu0 0
  %712 = vmatprep.subr.bf16.mxu0 0
  %713 = vmatpush1.bf16.msra.mxu0 0
  %714 = vmatprep.subr.bf16.mxu0 0
  %715 = vmatpush1.bf16.msra.mxu0 0
  %716 = vmatprep.mubr.bf16.mxu0 0
  %717 = vmatmul.mubr.bf16.gmra.mrb[0].mxu0 %v673
  %v718 = vpop.f32.mrb[0].mxu0
  %v719 = vadd.f32 %v598, %v718
  %v720 = vpop.f32.mrb[0].mxu0
  %v721 = vpop.f32.mrb[0].mxu0
  %v722 = vadd.f32 %v601, %v721
  %v723 = vpop.f32.mrb[0].mxu0
  %724 = vmatprep.mubr.bf16.mxu0 0
  %725 = vmatmul.mubr.bf16.gmra.mrb[0].mxu0 %v676
  %v726 = vpop.f32.mrb[0].mxu0
  %v727 = vadd.f32 %v606, %v726
  %v728 = vpop.f32.mrb[0].mxu0
  %v729 = vpop.f32.mrb[0].mxu0
  %v730 = vadd.f32 %v609, %v729
  %v731 = vpop.f32.mrb[0].mxu0
  %732 = vmatprep.mubr.bf16.mxu0 0
  %733 = vmatmul.mubr.bf16.gmra.mrb[0].mxu0 %v679
  %v734 = vpop.f32.mrb[0].mxu0
  %v735 = vadd.f32 %v614, %v734
  %v736 = vpop.f32.mrb[0].mxu0
  %v737 = vpop.f32.mrb[0].mxu0
  %v738 = vadd.f32 %v617, %v737
  %v739 = vpop.f32.mrb[0].mxu0
  %740 = vmatprep.mubr.bf16.mxu0 0
  %741 = vmatmul.mubr.bf16.gmra.mrb[0].mxu0 %v682
  %v742 = vpop.f32.mrb[0].mxu0
  %v743 = vadd.f32 %v622, %v742
  %v744 = vpop.f32.mrb[0].mxu0
  %v745 = vpop.f32.mrb[0].mxu0
  %v746 = vadd.f32 %v625, %v745
  %v747 = vpop.f32.mrb[0].mxu0
  %748 = vdwg.mxu0
  %v749 = vld [vmem:[#allocation2 + $0x20] sm:$0x1f]
  %v751 = vshrl.u32 %v536, 16
  %v753 = vrot.slane %v751, 4
  %v754 = vshll.u32 %v536, 16
  %v756 = vrot.slane %v754, 5
  %v757 = vor.u32 %v753, %v756
  %v758 = vrot.slane %v637, 4
  %v759 = vrot.slane %v640, 5
  %v760 = vor.u32 %v758, %v759
  %v761 = vsel %vm351, %v757, %v760
  %v762 = vrot.slane %v646, 4
  %v763 = vrot.slane %v649, 5
  %v764 = vor.u32 %v762, %v763
  %v765 = vsel %vm351, %v760, %v764
  %v766 = vrot.slane %v655, 4
  %v767 = vrot.slane %v658, 5
  %v768 = vor.u32 %v766, %v767
  %v769 = vsel %vm351, %v764, %v768
  %v771 = vshrl.u32 %v749, 16
  %v773 = vrot.slane %v771, 4
  %v774 = vshll.u32 %v749, 16
  %v776 = vrot.slane %v774, 5
  %v777 = vor.u32 %v773, %v776
  %v778 = vsel %vm351, %v768, %v777
  %v780 = vsel %vm41, %v761, 0
  %v783 = vsel %vm41, %v765, 0
  %v786 = vsel %vm41, %v769, 0
  %v789 = vsel %vm41, %v778, 0
  %791 = vmatprep.subr.bf16.mxu0 0
  %792 = vmatpush1.bf16.msra.mxu0 %v397
  %793 = vmatprep.subr.bf16.mxu0 0
  %794 = vmatpush1.bf16.msra.mxu0 %v398
  %795 = vmatprep.subr.bf16.mxu0 0
  %796 = vmatpush1.bf16.msra.mxu0 %v399
  %797 = vmatprep.subr.bf16.mxu0 0
  %798 = vmatpush1.bf16.msra.mxu0 %v400
  %799 = vmatprep.subr.bf16.mxu0 0
  %800 = vmatpush1.bf16.msra.mxu0 0
  %801 = vmatprep.subr.bf16.mxu0 0
  %802 = vmatpush1.bf16.msra.mxu0 0
  %803 = vmatprep.subr.bf16.mxu0 0
  %804 = vmatpush1.bf16.msra.mxu0 0
  %805 = vmatprep.subr.bf16.mxu0 0
  %806 = vmatpush1.bf16.msra.mxu0 0
  %807 = vmatprep.subr.bf16.mxu0 0
  %808 = vmatpush1.bf16.msra.mxu0 0
  %809 = vmatprep.subr.bf16.mxu0 0
  %810 = vmatpush1.bf16.msra.mxu0 0
  %811 = vmatprep.subr.bf16.mxu0 0
  %812 = vmatpush1.bf16.msra.mxu0 0
  %813 = vmatprep.subr.bf16.mxu0 0
  %814 = vmatpush1.bf16.msra.mxu0 0
  %815 = vmatprep.subr.bf16.mxu0 0
  %816 = vmatpush1.bf16.msra.mxu0 0
  %817 = vmatprep.subr.bf16.mxu0 0
  %818 = vmatpush1.bf16.msra.mxu0 0
  %819 = vmatprep.subr.bf16.mxu0 0
  %820 = vmatpush1.bf16.msra.mxu0 0
  %821 = vmatprep.subr.bf16.mxu0 0
  %822 = vmatpush1.bf16.msra.mxu0 0
  %823 = vmatprep.mubr.bf16.mxu0 0
  %824 = vmatmul.mubr.bf16.gmra.mrb[0].mxu0 %v780
  %v825 = vpop.f32.mrb[0].mxu0
  %v826 = vadd.f32 0.0, %v825
  %v827 = vpop.f32.mrb[0].mxu0
  %v828 = vpop.f32.mrb[0].mxu0
  %v829 = vadd.f32 0.0, %v828
  %v830 = vpop.f32.mrb[0].mxu0
  %831 = vmatprep.mubr.bf16.mxu0 0
  %832 = vmatmul.mubr.bf16.gmra.mrb[0].mxu0 %v783
  %v833 = vpop.f32.mrb[0].mxu0
  %v834 = vadd.f32 0.0, %v833
  %v835 = vpop.f32.mrb[0].mxu0
  %v836 = vpop.f32.mrb[0].mxu0
  %v837 = vadd.f32 0.0, %v836
  %v838 = vpop.f32.mrb[0].mxu0
  %839 = vmatprep.mubr.bf16.mxu0 0
  %840 = vmatmul.mubr.bf16.gmra.mrb[0].mxu0 %v786
  %v841 = vpop.f32.mrb[0].mxu0
  %v842 = vadd.f32 0.0, %v841
  %v843 = vpop.f32.mrb[0].mxu0
  %v844 = vpop.f32.mrb[0].mxu0
  %v845 = vadd.f32 0.0, %v844
  %v846 = vpop.f32.mrb[0].mxu0
  %847 = vmatprep.mubr.bf16.mxu0 0
  %848 = vmatmul.mubr.bf16.gmra.mrb[0].mxu0 %v789
  %v849 = vpop.f32.mrb[0].mxu0
  %v850 = vadd.f32 0.0, %v849
  %v851 = vpop.f32.mrb[0].mxu0
  %v852 = vpop.f32.mrb[0].mxu0
  %v853 = vadd.f32 0.0, %v852
  %v854 = vpop.f32.mrb[0].mxu0
  %855 = vdwg.mxu0
  %v856 = vadd.f32 %v719, %v826
  %v857 = vadd.f32 %v722, %v829
  %v858 = vadd.f32 %v727, %v834
  %v859 = vadd.f32 %v730, %v837
  %v860 = vadd.f32 %v735, %v842
  %v861 = vadd.f32 %v738, %v845
  %v862 = vadd.f32 %v743, %v850
  %v863 = vadd.f32 %v746, %v853
  %864 = vst.msk [vmem:[#allocation3 + $0x40] sm:$0xff] %vm41, %v856
  %865 = vst.msk [vmem:[#allocation3 + $0x48] sm:$0xff] %vm41, %v857
  %866 = vst.msk [vmem:[#allocation3 + $0x50] sm:$0xff] %vm41, %v858
  %867 = vst.msk [vmem:[#allocation3 + $0x58] sm:$0xff] %vm41, %v859
  %868 = vst.msk [vmem:[#allocation3 + $0x60] sm:$0xff] %vm41, %v860
  %869 = vst.msk [vmem:[#allocation3 + $0x68] sm:$0xff] %vm41, %v861
  %870 = vst.msk [vmem:[#allocation3 + $0x70] sm:$0xff] %vm41, %v862
  %871 = vst.msk [vmem:[#allocation3 + $0x78] sm:$0xff] %vm41, %v863
  %v872 = vld [vmem:[#allocation3] sm:$0xff]
  %v873 = vld [vmem:[#allocation3 + $0x8] sm:$0xff]
  %v874 = vld [vmem:[#allocation3 + $0x10] sm:$0xff]
  %v875 = vld [vmem:[#allocation3 + $0x18] sm:$0xff]
  %v876 = vld [vmem:[#allocation3 + $0x20] sm:$0xff]
  %v877 = vld [vmem:[#allocation3 + $0x28] sm:$0xff]
  %v878 = vld [vmem:[#allocation3 + $0x30] sm:$0xff]
  %v879 = vld [vmem:[#allocation3 + $0x38] sm:$0xff]
  %v880 = vld [vmem:[#allocation3 + $0x40] sm:$0xff]
  %v881 = vld [vmem:[#allocation3 + $0x48] sm:$0xff]
  %v882 = vld [vmem:[#allocation3 + $0x50] sm:$0xff]
  %v883 = vld [vmem:[#allocation3 + $0x58] sm:$0xff]
  %v884 = vld [vmem:[#allocation3 + $0x60] sm:$0xff]
  %v885 = vld [vmem:[#allocation3 + $0x68] sm:$0xff]
  %v886 = vld [vmem:[#allocation3 + $0x70] sm:$0xff]
  %v887 = vld [vmem:[#allocation3 + $0x78] sm:$0xff]
  %v888 = vsel %vm41, %v872, 0.0
  %v889 = vsel %vm41, %v873, 0.0
  %v890 = vadd.f32 %v888, %v889
  %v891 = vsel %vm41, %v874, 0.0
  %v892 = vadd.f32 %v890, %v891
  %v893 = vsel %vm41, %v875, 0.0
  %v894 = vadd.f32 %v892, %v893
  %v895 = vsel %vm41, %v876, 0.0
  %v896 = vadd.f32 %v894, %v895
  %v897 = vsel %vm41, %v877, 0.0
  %v898 = vadd.f32 %v896, %v897
  %v899 = vsel %vm41, %v878, 0.0
  %v900 = vadd.f32 %v898, %v899
  %v901 = vsel %vm41, %v879, 0.0
  %v902 = vadd.f32 %v900, %v901
  %v903 = vsel %vm41, %v880, 0.0
  %v904 = vadd.f32 %v902, %v903
  %v905 = vsel %vm41, %v881, 0.0
  %v906 = vadd.f32 %v904, %v905
  %v907 = vsel %vm41, %v882, 0.0
  %v908 = vadd.f32 %v906, %v907
  %v909 = vsel %vm41, %v883, 0.0
  %v910 = vadd.f32 %v908, %v909
  %v911 = vsel %vm41, %v884, 0.0
  %v912 = vadd.f32 %v910, %v911
  %v913 = vsel %vm41, %v885, 0.0
  %v914 = vadd.f32 %v912, %v913
  %v915 = vsel %vm41, %v886, 0.0
  %v916 = vadd.f32 %v914, %v915
  %v917 = vsel %vm41, %v887, 0.0
  %v918 = vadd.f32 %v916, %v917
  %v919 = vrot.slane %v918, 4
  %v920 = vadd.f32 %v918, %v919
  %v921 = vrot.slane %v920, 2
  %v922 = vadd.f32 %v920, %v921
  %v923 = vrot.slane %v922, 1
  %v924 = vadd.f32 %v922, %v923
  %v925 = vrcp.pop 128.0
  %v926 = vmul.f32 %v924, %v925
  %v927 = vsub.f32 %v872, %v926
  %v928 = vsub.f32 %v873, %v926
  %v929 = vsub.f32 %v874, %v926
  %v930 = vsub.f32 %v875, %v926
  %v931 = vsub.f32 %v876, %v926
  %v932 = vsub.f32 %v877, %v926
  %v933 = vsub.f32 %v878, %v926
  %v934 = vsub.f32 %v879, %v926
  %v935 = vsub.f32 %v880, %v926
  %v936 = vsub.f32 %v881, %v926
  %v937 = vsub.f32 %v882, %v926
  %v938 = vsub.f32 %v883, %v926
  %v939 = vsub.f32 %v884, %v926
  %v940 = vsub.f32 %v885, %v926
  %v941 = vsub.f32 %v886, %v926
  %v942 = vsub.f32 %v887, %v926
  %v943 = vmul.f32 %v927, %v927
  %v944 = vmul.f32 %v928, %v928
  %v945 = vmul.f32 %v929, %v929
  %v946 = vmul.f32 %v930, %v930
  %v947 = vmul.f32 %v931, %v931
  %v948 = vmul.f32 %v932, %v932
  %v949 = vmul.f32 %v933, %v933
  %v950 = vmul.f32 %v934, %v934
  %v951 = vmul.f32 %v935, %v935
  %v952 = vmul.f32 %v936, %v936
  %v953 = vmul.f32 %v937, %v937
  %v954 = vmul.f32 %v938, %v938
  %v955 = vmul.f32 %v939, %v939
  %v956 = vmul.f32 %v940, %v940
  %v957 = vmul.f32 %v941, %v941
  %v958 = vmul.f32 %v942, %v942
  %v959 = vsel %vm41, %v943, 0.0
  %v960 = vsel %vm41, %v944, 0.0
  %v961 = vadd.f32 %v959, %v960
  %v962 = vsel %vm41, %v945, 0.0
  %v963 = vadd.f32 %v961, %v962
  %v964 = vsel %vm41, %v946, 0.0
  %v965 = vadd.f32 %v963, %v964
  %v966 = vsel %vm41, %v947, 0.0
  %v967 = vadd.f32 %v965, %v966
  %v968 = vsel %vm41, %v948, 0.0
  %v969 = vadd.f32 %v967, %v968
  %v970 = vsel %vm41, %v949, 0.0
  %v971 = vadd.f32 %v969, %v970
  %v972 = vsel %vm41, %v950, 0.0
  %v973 = vadd.f32 %v971, %v972
  %v974 = vsel %vm41, %v951, 0.0
  %v975 = vadd.f32 %v973, %v974
  %v976 = vsel %vm41, %v952, 0.0
  %v977 = vadd.f32 %v975, %v976
  %v978 = vsel %vm41, %v953, 0.0
  %v979 = vadd.f32 %v977, %v978
  %v980 = vsel %vm41, %v954, 0.0
  %v981 = vadd.f32 %v979, %v980
  %v982 = vsel %vm41, %v955, 0.0
  %v983 = vadd.f32 %v981, %v982
  %v984 = vsel %vm41, %v956, 0.0
  %v985 = vadd.f32 %v983, %v984
  %v986 = vsel %vm41, %v957, 0.0
  %v987 = vadd.f32 %v985, %v986
  %v988 = vsel %vm41, %v958, 0.0
  %v989 = vadd.f32 %v987, %v988
  %v990 = vrot.slane %v989, 4
  %v991 = vadd.f32 %v989, %v990
  %v992 = vrot.slane %v991, 2
  %v993 = vadd.f32 %v991, %v992
  %v994 = vrot.slane %v993, 1
  %v995 = vadd.f32 %v993, %v994
  %v996 = vmul.f32 %v995, %v925
  %v997 = vadd.f32 %v996, 1e-05
  %v998 = vrsqrt.pop %v997
  %v999 = vmul.f32 %v927, %v998
  %v1000 = vmul.f32 %v928, %v998
  %v1001 = vmul.f32 %v929, %v998
  %v1002 = vmul.f32 %v930, %v998
  %v1003 = vmul.f32 %v931, %v998
  %v1004 = vmul.f32 %v932, %v998
  %v1005 = vmul.f32 %v933, %v998
  %v1006 = vmul.f32 %v934, %v998
  %v1007 = vmul.f32 %v935, %v998
  %v1008 = vmul.f32 %v936, %v998
  %v1009 = vmul.f32 %v937, %v998
  %v1010 = vmul.f32 %v938, %v998
  %v1011 = vmul.f32 %v939, %v998
  %v1012 = vmul.f32 %v940, %v998
  %v1013 = vmul.f32 %v941, %v998
  %v1014 = vmul.f32 %v942, %v998
  %v1015 = vmax.f32 %v999, 0.0
  %v1016 = vmax.f32 %v1000, 0.0
  %v1017 = vmax.f32 %v1001, 0.0
  %v1018 = vmax.f32 %v1002, 0.0
  %v1019 = vmax.f32 %v1003, 0.0
  %v1020 = vmax.f32 %v1004, 0.0
  %v1021 = vmax.f32 %v1005, 0.0
  %v1022 = vmax.f32 %v1006, 0.0
  %v1023 = vmax.f32 %v1007, 0.0
  %v1024 = vmax.f32 %v1008, 0.0
  %v1025 = vmax.f32 %v1009, 0.0
  %v1026 = vmax.f32 %v1010, 0.0
  %v1027 = vmax.f32 %v1011, 0.0
  %v1028 = vmax.f32 %v1012, 0.0
  %v1029 = vmax.f32 %v1013, 0.0
  %v1030 = vmax.f32 %v1014, 0.0
  %v1031 = vpack.c.bf16 %v1016, %v1015
  %v1032 = vpack.c.bf16 %v1018, %v1017
  %v1033 = vpack.c.bf16 %v1020, %v1019
  %v1034 = vpack.c.bf16 %v1022, %v1021
  %v1035 = vpack.c.bf16 %v1024, %v1023
  %v1036 = vpack.c.bf16 %v1026, %v1025
  %v1037 = vpack.c.bf16 %v1028, %v1027
  %v1038 = vpack.c.bf16 %v1030, %v1029
  %v1039 = vld [vmem:[%s2] sm:$0xf]
  %v1040 = vld [vmem:[%s2 + $0x4] sm:$0xf]
  %v1041 = vld [vmem:[%s2 + $0x8] sm:$0xf]
  %v1042 = vld [vmem:[%s2 + $0xc] sm:$0xf]
  %v1043 = vld [vmem:[%s2 + $0x10] sm:$0xf]
  %v1044 = vld [vmem:[%s2 + $0x14] sm:$0xf]
  %v1045 = vld [vmem:[%s2 + $0x18] sm:$0xf]
  %v1046 = vld [vmem:[%s2 + $0x1c] sm:$0xf]
  %s1047 = scalar_lea.vmem %s2, 32
  %v1048 = vld [vmem:[%s1047] sm:$0xf]
  %v1049 = vld [vmem:[%s1047 + $0x4] sm:$0xf]
  %v1050 = vld [vmem:[%s1047 + $0x8] sm:$0xf]
  %v1051 = vld [vmem:[%s1047 + $0xc] sm:$0xf]
  %v1052 = vld [vmem:[%s1047 + $0x10] sm:$0xf]
  %v1053 = vld [vmem:[%s1047 + $0x14] sm:$0xf]
  %v1054 = vld [vmem:[%s1047 + $0x18] sm:$0xf]
  %v1055 = vld [vmem:[%s1047 + $0x1c] sm:$0xf]
  %s1056 = scalar_lea.vmem %s2, 64
  %v1057 = vld [vmem:[%s1056] sm:$0xf]
  %v1058 = vld [vmem:[%s1056 + $0x4] sm:$0xf]
  %v1059 = vld [vmem:[%s1056 + $0x8] sm:$0xf]
  %v1060 = vld [vmem:[%s1056 + $0xc] sm:$0xf]
  %v1061 = vld [vmem:[%s1056 + $0x10] sm:$0xf]
  %v1062 = vld [vmem:[%s1056 + $0x14] sm:$0xf]
  %v1063 = vld [vmem:[%s1056 + $0x18] sm:$0xf]
  %v1064 = vld [vmem:[%s1056 + $0x1c] sm:$0xf]
  %1065 = vst.msk [vmem:[#allocation2] sm:$0xff] %vm41, 0
  %1066 = vst.msk [vmem:[#allocation2 + $0x8] sm:$0xff] %vm41, 0
  %1067 = vst.msk [vmem:[#allocation2 + $0x10] sm:$0xff] %vm41, 0
  %1068 = vst.msk [vmem:[#allocation2 + $0x18] sm:$0xff] %vm41, 0
  %1069 = vst.msk [vmem:[#allocation2 + $0x20] sm:$0xff] %vm41, 0
  %v1074 = vrot.slane %v1031, 4
  %v1075 = vrot.slane %v1032, 4
  %v1076 = vsel %vm63, %v1074, %v1075
  %v1077 = vrot.slane %v1033, 4
  %v1078 = vsel %vm63, %v1075, %v1077
  %v1079 = vrot.slane %v1034, 4
  %v1080 = vsel %vm63, %v1077, %v1079
  %1086 = vst.msk [vmem:[#allocation2] sm:$0xf0] %vm76, %v1074
  %1087 = vst.msk [vmem:[#allocation2 + $0x8] sm:$0xff] %vm41, %v1076
  %1088 = vst.msk [vmem:[#allocation2 + $0x10] sm:$0xff] %vm41, %v1078
  %1089 = vst.msk [vmem:[#allocation2 + $0x18] sm:$0xff] %vm41, %v1080
  %1090 = vst.msk [vmem:[#allocation2 + $0x20] sm:$0xf] %vm81, %v1079
  %v1091 = vld [vmem:[#allocation2] sm:$0xf8]
  %v1092 = vld [vmem:[#allocation2 + $0x8] sm:$0xff]
  %v1093 = vld [vmem:[#allocation2 + $0x10] sm:$0xff]
  %v1094 = vld [vmem:[#allocation2 + $0x18] sm:$0xff]
  %v1095 = vld [vmem:[#allocation2 + $0x20] sm:$0xf]
  %v1096 = vld [vmem:[#allocation2] sm:$0xf0]
  %v1102 = vrot.slane %v1096, 4
  %v1103 = vrot.slane %v1092, 4
  %v1104 = vsel %vm63, %v1102, %v1103
  %v1105 = vrot.slane %v1093, 4
  %v1106 = vsel %vm63, %v1103, %v1105
  %v1107 = vrot.slane %v1094, 4
  %v1108 = vsel %vm63, %v1105, %v1107
  %v1109 = vrot.slane %v1095, 4
  %v1110 = vsel %vm63, %v1107, %v1109
  %v1119 = vunpack.c.l.b16 %v1048
  %v1120 = vunpack.c.l.b16 %v1049
  %v1121 = vunpack.c.l.b16 %v1050
  %v1122 = vunpack.c.l.b16 %v1051
  %v1123 = vunpack.c.l.b16 %v1052
  %v1124 = vunpack.c.l.b16 %v1053
  %v1125 = vunpack.c.l.b16 %v1054
  %v1126 = vunpack.c.l.b16 %v1055
  %v1127 = vpack.c.b16 %v1120, %v1119
  %v1128 = vpack.c.b16 %v1122, %v1121
  %v1129 = vpack.c.b16 %v1124, %v1123
  %v1130 = vpack.c.b16 %v1126, %v1125
  %v1136 = vsel %vm41, %v1104, 0
  %v1139 = vsel %vm41, %v1106, 0
  %v1142 = vsel %vm41, %v1108, 0
  %v1145 = vsel %vm41, %v1110, 0
  %1147 = vmatprep.subr.bf16.mxu0 0
  %1148 = vmatpush1.bf16.msra.mxu0 %v1127
  %1149 = vmatprep.subr.bf16.mxu0 0
  %1150 = vmatpush1.bf16.msra.mxu0 %v1128
  %1151 = vmatprep.subr.bf16.mxu0 0
  %1152 = vmatpush1.bf16.msra.mxu0 %v1129
  %1153 = vmatprep.subr.bf16.mxu0 0
  %1154 = vmatpush1.bf16.msra.mxu0 %v1130
  %1155 = vmatprep.subr.bf16.mxu0 0
  %1156 = vmatpush1.bf16.msra.mxu0 0
  %1157 = vmatprep.subr.bf16.mxu0 0
  %1158 = vmatpush1.bf16.msra.mxu0 0
  %1159 = vmatprep.subr.bf16.mxu0 0
  %1160 = vmatpush1.bf16.msra.mxu0 0
  %1161 = vmatprep.subr.bf16.mxu0 0
  %1162 = vmatpush1.bf16.msra.mxu0 0
  %1163 = vmatprep.subr.bf16.mxu0 0
  %1164 = vmatpush1.bf16.msra.mxu0 0
  %1165 = vmatprep.subr.bf16.mxu0 0
  %1166 = vmatpush1.bf16.msra.mxu0 0
  %1167 = vmatprep.subr.bf16.mxu0 0
  %1168 = vmatpush1.bf16.msra.mxu0 0
  %1169 = vmatprep.subr.bf16.mxu0 0
  %1170 = vmatpush1.bf16.msra.mxu0 0
  %1171 = vmatprep.subr.bf16.mxu0 0
  %1172 = vmatpush1.bf16.msra.mxu0 0
  %1173 = vmatprep.subr.bf16.mxu0 0
  %1174 = vmatpush1.bf16.msra.mxu0 0
  %1175 = vmatprep.subr.bf16.mxu0 0
  %1176 = vmatpush1.bf16.msra.mxu0 0
  %1177 = vmatprep.subr.bf16.mxu0 0
  %1178 = vmatpush1.bf16.msra.mxu0 0
  %1179 = vmatprep.mubr.bf16.mxu0 0
  %1180 = vmatmul.mubr.bf16.gmra.mrb[0].mxu0 %v1136
  %v1181 = vpop.f32.mrb[0].mxu0
  %v1182 = vadd.f32 0.0, %v1181
  %v1183 = vpop.f32.mrb[0].mxu0
  %v1184 = vpop.f32.mrb[0].mxu0
  %v1185 = vadd.f32 0.0, %v1184
  %v1186 = vpop.f32.mrb[0].mxu0
  %1187 = vmatprep.mubr.bf16.mxu0 0
  %1188 = vmatmul.mubr.bf16.gmra.mrb[0].mxu0 %v1139
  %v1189 = vpop.f32.mrb[0].mxu0
  %v1190 = vadd.f32 0.0, %v1189
  %v1191 = vpop.f32.mrb[0].mxu0
  %v1192 = vpop.f32.mrb[0].mxu0
  %v1193 = vadd.f32 0.0, %v1192
  %v1194 = vpop.f32.mrb[0].mxu0
  %1195 = vmatprep.mubr.bf16.mxu0 0
  %1196 = vmatmul.mubr.bf16.gmra.mrb[0].mxu0 %v1142
  %v1197 = vpop.f32.mrb[0].mxu0
  %v1198 = vadd.f32 0.0, %v1197
  %v1199 = vpop.f32.mrb[0].mxu0
  %v1200 = vpop.f32.mrb[0].mxu0
  %v1201 = vadd.f32 0.0, %v1200
  %v1202 = vpop.f32.mrb[0].mxu0
  %1203 = vmatprep.mubr.bf16.mxu0 0
  %1204 = vmatmul.mubr.bf16.gmra.mrb[0].mxu0 %v1145
  %v1205 = vpop.f32.mrb[0].mxu0
  %v1206 = vadd.f32 0.0, %v1205
  %v1207 = vpop.f32.mrb[0].mxu0
  %v1208 = vpop.f32.mrb[0].mxu0
  %v1209 = vadd.f32 0.0, %v1208
  %v1210 = vpop.f32.mrb[0].mxu0
  %1211 = vdwg.mxu0
  %v1213 = vshrl.u32 %v1091, 16
  %v1215 = vrot.slane %v1213, 3
  %v1216 = vshll.u32 %v1091, 16
  %v1218 = vrot.slane %v1216, 4
  %v1219 = vor.u32 %v1215, %v1218
  %v1221 = vshrl.u32 %v1092, 16
  %v1223 = vrot.slane %v1221, 3
  %v1224 = vshll.u32 %v1092, 16
  %v1226 = vrot.slane %v1224, 4
  %v1227 = vor.u32 %v1223, %v1226
  %v1228 = vsel %vm204, %v1219, %v1227
  %v1230 = vshrl.u32 %v1093, 16
  %v1232 = vrot.slane %v1230, 3
  %v1233 = vshll.u32 %v1093, 16
  %v1235 = vrot.slane %v1233, 4
  %v1236 = vor.u32 %v1232, %v1235
  %v1237 = vsel %vm204, %v1227, %v1236
  %v1239 = vshrl.u32 %v1094, 16
  %v1241 = vrot.slane %v1239, 3
  %v1242 = vshll.u32 %v1094, 16
  %v1244 = vrot.slane %v1242, 4
  %v1245 = vor.u32 %v1241, %v1244
  %v1246 = vsel %vm204, %v1236, %v1245
  %v1248 = vshrl.u32 %v1095, 16
  %v1250 = vrot.slane %v1248, 3
  %v1251 = vshll.u32 %v1095, 16
  %v1253 = vrot.slane %v1251, 4
  %v1254 = vor.u32 %v1250, %v1253
  %v1255 = vsel %vm204, %v1245, %v1254
  %v1264 = vunpack.c.l.b16 %v1039
  %v1265 = vunpack.c.l.b16 %v1040
  %v1266 = vunpack.c.l.b16 %v1041
  %v1267 = vunpack.c.l.b16 %v1042
  %v1268 = vunpack.c.l.b16 %v1043
  %v1269 = vunpack.c.l.b16 %v1044
  %v1270 = vunpack.c.l.b16 %v1045
  %v1271 = vunpack.c.l.b16 %v1046
  %v1272 = vpack.c.b16 %v1265, %v1264
  %v1273 = vpack.c.b16 %v1267, %v1266
  %v1274 = vpack.c.b16 %v1269, %v1268
  %v1275 = vpack.c.b16 %v1271, %v1270
  %v1281 = vsel %vm41, %v1228, 0
  %v1284 = vsel %vm41, %v1237, 0
  %v1287 = vsel %vm41, %v1246, 0
  %v1290 = vsel %vm41, %v1255, 0
  %1292 = vmatprep.subr.bf16.mxu0 0
  %1293 = vmatpush1.bf16.msra.mxu0 %v1272
  %1294 = vmatprep.subr.bf16.mxu0 0
  %1295 = vmatpush1.bf16.msra.mxu0 %v1273
  %1296 = vmatprep.subr.bf16.mxu0 0
  %1297 = vmatpush1.bf16.msra.mxu0 %v1274
  %1298 = vmatprep.subr.bf16.mxu0 0
  %1299 = vmatpush1.bf16.msra.mxu0 %v1275
  %1300 = vmatprep.subr.bf16.mxu0 0
  %1301 = vmatpush1.bf16.msra.mxu0 0
  %1302 = vmatprep.subr.bf16.mxu0 0
  %1303 = vmatpush1.bf16.msra.mxu0 0
  %1304 = vmatprep.subr.bf16.mxu0 0
  %1305 = vmatpush1.bf16.msra.mxu0 0
  %1306 = vmatprep.subr.bf16.mxu0 0
  %1307 = vmatpush1.bf16.msra.mxu0 0
  %1308 = vmatprep.subr.bf16.mxu0 0
  %1309 = vmatpush1.bf16.msra.mxu0 0
  %1310 = vmatprep.subr.bf16.mxu0 0
  %1311 = vmatpush1.bf16.msra.mxu0 0
  %1312 = vmatprep.subr.bf16.mxu0 0
  %1313 = vmatpush1.bf16.msra.mxu0 0
  %1314 = vmatprep.subr.bf16.mxu0 0
  %1315 = vmatpush1.bf16.msra.mxu0 0
  %1316 = vmatprep.subr.bf16.mxu0 0
  %1317 = vmatpush1.bf16.msra.mxu0 0
  %1318 = vmatprep.subr.bf16.mxu0 0
  %1319 = vmatpush1.bf16.msra.mxu0 0
  %1320 = vmatprep.subr.bf16.mxu0 0
  %1321 = vmatpush1.bf16.msra.mxu0 0
  %1322 = vmatprep.subr.bf16.mxu0 0
  %1323 = vmatpush1.bf16.msra.mxu0 0
  %1324 = vmatprep.mubr.bf16.mxu0 0
  %1325 = vmatmul.mubr.bf16.gmra.mrb[0].mxu0 %v1281
  %v1326 = vpop.f32.mrb[0].mxu0
  %v1327 = vadd.f32 %v1182, %v1326
  %v1328 = vpop.f32.mrb[0].mxu0
  %v1329 = vpop.f32.mrb[0].mxu0
  %v1330 = vadd.f32 %v1185, %v1329
  %v1331 = vpop.f32.mrb[0].mxu0
  %1332 = vmatprep.mubr.bf16.mxu0 0
  %1333 = vmatmul.mubr.bf16.gmra.mrb[0].mxu0 %v1284
  %v1334 = vpop.f32.mrb[0].mxu0
  %v1335 = vadd.f32 %v1190, %v1334
  %v1336 = vpop.f32.mrb[0].mxu0
  %v1337 = vpop.f32.mrb[0].mxu0
  %v1338 = vadd.f32 %v1193, %v1337
  %v1339 = vpop.f32.mrb[0].mxu0
  %1340 = vmatprep.mubr.bf16.mxu0 0
  %1341 = vmatmul.mubr.bf16.gmra.mrb[0].mxu0 %v1287
  %v1342 = vpop.f32.mrb[0].mxu0
  %v1343 = vadd.f32 %v1198, %v1342
  %v1344 = vpop.f32.mrb[0].mxu0
  %v1345 = vpop.f32.mrb[0].mxu0
  %v1346 = vadd.f32 %v1201, %v1345
  %v1347 = vpop.f32.mrb[0].mxu0
  %1348 = vmatprep.mubr.bf16.mxu0 0
  %1349 = vmatmul.mubr.bf16.gmra.mrb[0].mxu0 %v1290
  %v1350 = vpop.f32.mrb[0].mxu0
  %v1351 = vadd.f32 %v1206, %v1350
  %v1352 = vpop.f32.mrb[0].mxu0
  %v1353 = vpop.f32.mrb[0].mxu0
  %v1354 = vadd.f32 %v1209, %v1353
  %v1355 = vpop.f32.mrb[0].mxu0
  %1356 = vdwg.mxu0
  %v1357 = vld [vmem:[#allocation2 + $0x20] sm:$0x1f]
  %v1359 = vshrl.u32 %v1096, 16
  %v1361 = vrot.slane %v1359, 4
  %v1362 = vshll.u32 %v1096, 16
  %v1364 = vrot.slane %v1362, 5
  %v1365 = vor.u32 %v1361, %v1364
  %v1366 = vrot.slane %v1221, 4
  %v1367 = vrot.slane %v1224, 5
  %v1368 = vor.u32 %v1366, %v1367
  %v1369 = vsel %vm351, %v1365, %v1368
  %v1370 = vrot.slane %v1230, 4
  %v1371 = vrot.slane %v1233, 5
  %v1372 = vor.u32 %v1370, %v1371
  %v1373 = vsel %vm351, %v1368, %v1372
  %v1374 = vrot.slane %v1239, 4
  %v1375 = vrot.slane %v1242, 5
  %v1376 = vor.u32 %v1374, %v1375
  %v1377 = vsel %vm351, %v1372, %v1376
  %v1379 = vshrl.u32 %v1357, 16
  %v1381 = vrot.slane %v1379, 4
  %v1382 = vshll.u32 %v1357, 16
  %v1384 = vrot.slane %v1382, 5
  %v1385 = vor.u32 %v1381, %v1384
  %v1386 = vsel %vm351, %v1376, %v1385
  %v1395 = vunpack.c.l.b16 %v1057
  %v1396 = vunpack.c.l.b16 %v1058
  %v1397 = vunpack.c.l.b16 %v1059
  %v1398 = vunpack.c.l.b16 %v1060
  %v1399 = vunpack.c.l.b16 %v1061
  %v1400 = vunpack.c.l.b16 %v1062
  %v1401 = vunpack.c.l.b16 %v1063
  %v1402 = vunpack.c.l.b16 %v1064
  %v1403 = vpack.c.b16 %v1396, %v1395
  %v1404 = vpack.c.b16 %v1398, %v1397
  %v1405 = vpack.c.b16 %v1400, %v1399
  %v1406 = vpack.c.b16 %v1402, %v1401
  %v1412 = vsel %vm41, %v1369, 0
  %v1415 = vsel %vm41, %v1373, 0
  %v1418 = vsel %vm41, %v1377, 0
  %v1421 = vsel %vm41, %v1386, 0
  %1423 = vmatprep.subr.bf16.mxu0 0
  %1424 = vmatpush1.bf16.msra.mxu0 %v1403
  %1425 = vmatprep.subr.bf16.mxu0 0
  %1426 = vmatpush1.bf16.msra.mxu0 %v1404
  %1427 = vmatprep.subr.bf16.mxu0 0
  %1428 = vmatpush1.bf16.msra.mxu0 %v1405
  %1429 = vmatprep.subr.bf16.mxu0 0
  %1430 = vmatpush1.bf16.msra.mxu0 %v1406
  %1431 = vmatprep.subr.bf16.mxu0 0
  %1432 = vmatpush1.bf16.msra.mxu0 0
  %1433 = vmatprep.subr.bf16.mxu0 0
  %1434 = vmatpush1.bf16.msra.mxu0 0
  %1435 = vmatprep.subr.bf16.mxu0 0
  %1436 = vmatpush1.bf16.msra.mxu0 0
  %1437 = vmatprep.subr.bf16.mxu0 0
  %1438 = vmatpush1.bf16.msra.mxu0 0
  %1439 = vmatprep.subr.bf16.mxu0 0
  %1440 = vmatpush1.bf16.msra.mxu0 0
  %1441 = vmatprep.subr.bf16.mxu0 0
  %1442 = vmatpush1.bf16.msra.mxu0 0
  %1443 = vmatprep.subr.bf16.mxu0 0
  %1444 = vmatpush1.bf16.msra.mxu0 0
  %1445 = vmatprep.subr.bf16.mxu0 0
  %1446 = vmatpush1.bf16.msra.mxu0 0
  %1447 = vmatprep.subr.bf16.mxu0 0
  %1448 = vmatpush1.bf16.msra.mxu0 0
  %1449 = vmatprep.subr.bf16.mxu0 0
  %1450 = vmatpush1.bf16.msra.mxu0 0
  %1451 = vmatprep.subr.bf16.mxu0 0
  %1452 = vmatpush1.bf16.msra.mxu0 0
  %1453 = vmatprep.subr.bf16.mxu0 0
  %1454 = vmatpush1.bf16.msra.mxu0 0
  %1455 = vmatprep.mubr.bf16.mxu0 0
  %1456 = vmatmul.mubr.bf16.gmra.mrb[0].mxu0 %v1412
  %v1457 = vpop.f32.mrb[0].mxu0
  %v1458 = vadd.f32 0.0, %v1457
  %v1459 = vpop.f32.mrb[0].mxu0
  %v1460 = vpop.f32.mrb[0].mxu0
  %v1461 = vadd.f32 0.0, %v1460
  %v1462 = vpop.f32.mrb[0].mxu0
  %1463 = vmatprep.mubr.bf16.mxu0 0
  %1464 = vmatmul.mubr.bf16.gmra.mrb[0].mxu0 %v1415
  %v1465 = vpop.f32.mrb[0].mxu0
  %v1466 = vadd.f32 0.0, %v1465
  %v1467 = vpop.f32.mrb[0].mxu0
  %v1468 = vpop.f32.mrb[0].mxu0
  %v1469 = vadd.f32 0.0, %v1468
  %v1470 = vpop.f32.mrb[0].mxu0
  %1471 = vmatprep.mubr.bf16.mxu0 0
  %1472 = vmatmul.mubr.bf16.gmra.mrb[0].mxu0 %v1418
  %v1473 = vpop.f32.mrb[0].mxu0
  %v1474 = vadd.f32 0.0, %v1473
  %v1475 = vpop.f32.mrb[0].mxu0
  %v1476 = vpop.f32.mrb[0].mxu0
  %v1477 = vadd.f32 0.0, %v1476
  %v1478 = vpop.f32.mrb[0].mxu0
  %1479 = vmatprep.mubr.bf16.mxu0 0
  %1480 = vmatmul.mubr.bf16.gmra.mrb[0].mxu0 %v1421
  %v1481 = vpop.f32.mrb[0].mxu0
  %v1482 = vadd.f32 0.0, %v1481
  %v1483 = vpop.f32.mrb[0].mxu0
  %v1484 = vpop.f32.mrb[0].mxu0
  %v1485 = vadd.f32 0.0, %v1484
  %v1486 = vpop.f32.mrb[0].mxu0
  %1487 = vdwg.mxu0
  %v1488 = vadd.f32 %v1327, %v1458
  %v1489 = vadd.f32 %v1330, %v1461
  %v1490 = vadd.f32 %v1335, %v1466
  %v1491 = vadd.f32 %v1338, %v1469
  %v1492 = vadd.f32 %v1343, %v1474
  %v1493 = vadd.f32 %v1346, %v1477
  %v1494 = vadd.f32 %v1351, %v1482
  %v1495 = vadd.f32 %v1354, %v1485
  %1496 = vst.msk [vmem:[#allocation3] sm:$0xff] %vm41, %v1488
  %1497 = vst.msk [vmem:[#allocation3 + $0x8] sm:$0xff] %vm41, %v1489
  %1498 = vst.msk [vmem:[#allocation3 + $0x10] sm:$0xff] %vm41, %v1490
  %1499 = vst.msk [vmem:[#allocation3 + $0x18] sm:$0xff] %vm41, %v1491
  %1500 = vst.msk [vmem:[#allocation3 + $0x20] sm:$0xff] %vm41, %v1492
  %1501 = vst.msk [vmem:[#allocation3 + $0x28] sm:$0xff] %vm41, %v1493
  %1502 = vst.msk [vmem:[#allocation3 + $0x30] sm:$0xff] %vm41, %v1494
  %1503 = vst.msk [vmem:[#allocation3 + $0x38] sm:$0xff] %vm41, %v1495
  %v1508 = vrot.slane %v1035, 4
  %v1509 = vrot.slane %v1036, 4
  %v1510 = vsel %vm63, %v1508, %v1509
  %v1511 = vrot.slane %v1037, 4
  %v1512 = vsel %vm63, %v1509, %v1511
  %v1513 = vrot.slane %v1038, 4
  %v1514 = vsel %vm63, %v1511, %v1513
  %1520 = vst.msk [vmem:[#allocation2] sm:$0xf0] %vm76, %v1508
  %1521 = vst.msk [vmem:[#allocation2 + $0x8] sm:$0xff] %vm41, %v1510
  %1522 = vst.msk [vmem:[#allocation2 + $0x10] sm:$0xff] %vm41, %v1512
  %1523 = vst.msk [vmem:[#allocation2 + $0x18] sm:$0xff] %vm41, %v1514
  %1524 = vst.msk [vmem:[#allocation2 + $0x20] sm:$0xf] %vm81, %v1513
  %v1525 = vld [vmem:[#allocation2] sm:$0xf8]
  %v1526 = vld [vmem:[#allocation2 + $0x8] sm:$0xff]
  %v1527 = vld [vmem:[#allocation2 + $0x10] sm:$0xff]
  %v1528 = vld [vmem:[#allocation2 + $0x18] sm:$0xff]
  %v1529 = vld [vmem:[#allocation2 + $0x20] sm:$0xf]
  %v1530 = vld [vmem:[#allocation2] sm:$0xf0]
  %v1536 = vrot.slane %v1530, 4
  %v1537 = vrot.slane %v1526, 4
  %v1538 = vsel %vm63, %v1536, %v1537
  %v1539 = vrot.slane %v1527, 4
  %v1540 = vsel %vm63, %v1537, %v1539
  %v1541 = vrot.slane %v1528, 4
  %v1542 = vsel %vm63, %v1539, %v1541
  %v1543 = vrot.slane %v1529, 4
  %v1544 = vsel %vm63, %v1541, %v1543
  %v1546 = vsel %vm41, %v1538, 0
  %v1549 = vsel %vm41, %v1540, 0
  %v1552 = vsel %vm41, %v1542, 0
  %v1555 = vsel %vm41, %v1544, 0
  %1557 = vmatprep.subr.bf16.mxu0 0
  %1558 = vmatpush1.bf16.msra.mxu0 %v1127
  %1559 = vmatprep.subr.bf16.mxu0 0
  %1560 = vmatpush1.bf16.msra.mxu0 %v1128
  %1561 = vmatprep.subr.bf16.mxu0 0
  %1562 = vmatpush1.bf16.msra.mxu0 %v1129
  %1563 = vmatprep.subr.bf16.mxu0 0
  %1564 = vmatpush1.bf16.msra.mxu0 %v1130
  %1565 = vmatprep.subr.bf16.mxu0 0
  %1566 = vmatpush1.bf16.msra.mxu0 0
  %1567 = vmatprep.subr.bf16.mxu0 0
  %1568 = vmatpush1.bf16.msra.mxu0 0
  %1569 = vmatprep.subr.bf16.mxu0 0
  %1570 = vmatpush1.bf16.msra.mxu0 0
  %1571 = vmatprep.subr.bf16.mxu0 0
  %1572 = vmatpush1.bf16.msra.mxu0 0
  %1573 = vmatprep.subr.bf16.mxu0 0
  %1574 = vmatpush1.bf16.msra.mxu0 0
  %1575 = vmatprep.subr.bf16.mxu0 0
  %1576 = vmatpush1.bf16.msra.mxu0 0
  %1577 = vmatprep.subr.bf16.mxu0 0
  %1578 = vmatpush1.bf16.msra.mxu0 0
  %1579 = vmatprep.subr.bf16.mxu0 0
  %1580 = vmatpush1.bf16.msra.mxu0 0
  %1581 = vmatprep.subr.bf16.mxu0 0
  %1582 = vmatpush1.bf16.msra.mxu0 0
  %1583 = vmatprep.subr.bf16.mxu0 0
  %1584 = vmatpush1.bf16.msra.mxu0 0
  %1585 = vmatprep.subr.bf16.mxu0 0
  %1586 = vmatpush1.bf16.msra.mxu0 0
  %1587 = vmatprep.subr.bf16.mxu0 0
  %1588 = vmatpush1.bf16.msra.mxu0 0
  %1589 = vmatprep.mubr.bf16.mxu0 0
  %1590 = vmatmul.mubr.bf16.gmra.mrb[0].mxu0 %v1546
  %v1591 = vpop.f32.mrb[0].mxu0
  %v1592 = vadd.f32 0.0, %v1591
  %v1593 = vpop.f32.mrb[0].mxu0
  %v1594 = vpop.f32.mrb[0].mxu0
  %v1595 = vadd.f32 0.0, %v1594
  %v1596 = vpop.f32.mrb[0].mxu0
  %1597 = vmatprep.mubr.bf16.mxu0 0
  %1598 = vmatmul.mubr.bf16.gmra.mrb[0].mxu0 %v1549
  %v1599 = vpop.f32.mrb[0].mxu0
  %v1600 = vadd.f32 0.0, %v1599
  %v1601 = vpop.f32.mrb[0].mxu0
  %v1602 = vpop.f32.mrb[0].mxu0
  %v1603 = vadd.f32 0.0, %v1602
  %v1604 = vpop.f32.mrb[0].mxu0
  %1605 = vmatprep.mubr.bf16.mxu0 0
  %1606 = vmatmul.mubr.bf16.gmra.mrb[0].mxu0 %v1552
  %v1607 = vpop.f32.mrb[0].mxu0
  %v1608 = vadd.f32 0.0, %v1607
  %v1609 = vpop.f32.mrb[0].mxu0
  %v1610 = vpop.f32.mrb[0].mxu0
  %v1611 = vadd.f32 0.0, %v1610
  %v1612 = vpop.f32.mrb[0].mxu0
  %1613 = vmatprep.mubr.bf16.mxu0 0
  %1614 = vmatmul.mubr.bf16.gmra.mrb[0].mxu0 %v1555
  %v1615 = vpop.f32.mrb[0].mxu0
  %v1616 = vadd.f32 0.0, %v1615
  %v1617 = vpop.f32.mrb[0].mxu0
  %v1618 = vpop.f32.mrb[0].mxu0
  %v1619 = vadd.f32 0.0, %v1618
  %v1620 = vpop.f32.mrb[0].mxu0
  %1621 = vdwg.mxu0
  %v1623 = vshrl.u32 %v1525, 16
  %v1625 = vrot.slane %v1623, 3
  %v1626 = vshll.u32 %v1525, 16
  %v1628 = vrot.slane %v1626, 4
  %v1629 = vor.u32 %v1625, %v1628
  %v1631 = vshrl.u32 %v1526, 16
  %v1633 = vrot.slane %v1631, 3
  %v1634 = vshll.u32 %v1526, 16
  %v1636 = vrot.slane %v1634, 4
  %v1637 = vor.u32 %v1633, %v1636
  %v1638 = vsel %vm204, %v1629, %v1637
  %v1640 = vshrl.u32 %v1527, 16
  %v1642 = vrot.slane %v1640, 3
  %v1643 = vshll.u32 %v1527, 16
  %v1645 = vrot.slane %v1643, 4
  %v1646 = vor.u32 %v1642, %v1645
  %v1647 = vsel %vm204, %v1637, %v1646
  %v1649 = vshrl.u32 %v1528, 16
  %v1651 = vrot.slane %v1649, 3
  %v1652 = vshll.u32 %v1528, 16
  %v1654 = vrot.slane %v1652, 4
  %v1655 = vor.u32 %v1651, %v1654
  %v1656 = vsel %vm204, %v1646, %v1655
  %v1658 = vshrl.u32 %v1529, 16
  %v1660 = vrot.slane %v1658, 3
  %v1661 = vshll.u32 %v1529, 16
  %v1663 = vrot.slane %v1661, 4
  %v1664 = vor.u32 %v1660, %v1663
  %v1665 = vsel %vm204, %v1655, %v1664
  %v1667 = vsel %vm41, %v1638, 0
  %v1670 = vsel %vm41, %v1647, 0
  %v1673 = vsel %vm41, %v1656, 0
  %v1676 = vsel %vm41, %v1665, 0
  %1678 = vmatprep.subr.bf16.mxu0 0
  %1679 = vmatpush1.bf16.msra.mxu0 %v1272
  %1680 = vmatprep.subr.bf16.mxu0 0
  %1681 = vmatpush1.bf16.msra.mxu0 %v1273
  %1682 = vmatprep.subr.bf16.mxu0 0
  %1683 = vmatpush1.bf16.msra.mxu0 %v1274
  %1684 = vmatprep.subr.bf16.mxu0 0
  %1685 = vmatpush1.bf16.msra.mxu0 %v1275
  %1686 = vmatprep.subr.bf16.mxu0 0
  %1687 = vmatpush1.bf16.msra.mxu0 0
  %1688 = vmatprep.subr.bf16.mxu0 0
  %1689 = vmatpush1.bf16.msra.mxu0 0
  %1690 = vmatprep.subr.bf16.mxu0 0
  %1691 = vmatpush1.bf16.msra.mxu0 0
  %1692 = vmatprep.subr.bf16.mxu0 0
  %1693 = vmatpush1.bf16.msra.mxu0 0
  %1694 = vmatprep.subr.bf16.mxu0 0
  %1695 = vmatpush1.bf16.msra.mxu0 0
  %1696 = vmatprep.subr.bf16.mxu0 0
  %1697 = vmatpush1.bf16.msra.mxu0 0
  %1698 = vmatprep.subr.bf16.mxu0 0
  %1699 = vmatpush1.bf16.msra.mxu0 0
  %1700 = vmatprep.subr.bf16.mxu0 0
  %1701 = vmatpush1.bf16.msra.mxu0 0
  %1702 = vmatprep.subr.bf16.mxu0 0
  %1703 = vmatpush1.bf16.msra.mxu0 0
  %1704 = vmatprep.subr.bf16.mxu0 0
  %1705 = vmatpush1.bf16.msra.mxu0 0
  %1706 = vmatprep.subr.bf16.mxu0 0
  %1707 = vmatpush1.bf16.msra.mxu0 0
  %1708 = vmatprep.subr.bf16.mxu0 0
  %1709 = vmatpush1.bf16.msra.mxu0 0
  %1710 = vmatprep.mubr.bf16.mxu0 0
  %1711 = vmatmul.mubr.bf16.gmra.mrb[0].mxu0 %v1667
  %v1712 = vpop.f32.mrb[0].mxu0
  %v1713 = vadd.f32 %v1592, %v1712
  %v1714 = vpop.f32.mrb[0].mxu0
  %v1715 = vpop.f32.mrb[0].mxu0
  %v1716 = vadd.f32 %v1595, %v1715
  %v1717 = vpop.f32.mrb[0].mxu0
  %1718 = vmatprep.mubr.bf16.mxu0 0
  %1719 = vmatmul.mubr.bf16.gmra.mrb[0].mxu0 %v1670
  %v1720 = vpop.f32.mrb[0].mxu0
  %v1721 = vadd.f32 %v1600, %v1720
  %v1722 = vpop.f32.mrb[0].mxu0
  %v1723 = vpop.f32.mrb[0].mxu0
  %v1724 = vadd.f32 %v1603, %v1723
  %v1725 = vpop.f32.mrb[0].mxu0
  %1726 = vmatprep.mubr.bf16.mxu0 0
  %1727 = vmatmul.mubr.bf16.gmra.mrb[0].mxu0 %v1673
  %v1728 = vpop.f32.mrb[0].mxu0
  %v1729 = vadd.f32 %v1608, %v1728
  %v1730 = vpop.f32.mrb[0].mxu0
  %v1731 = vpop.f32.mrb[0].mxu0
  %v1732 = vadd.f32 %v1611, %v1731
  %v1733 = vpop.f32.mrb[0].mxu0
  %1734 = vmatprep.mubr.bf16.mxu0 0
  %1735 = vmatmul.mubr.bf16.gmra.mrb[0].mxu0 %v1676
  %v1736 = vpop.f32.mrb[0].mxu0
  %v1737 = vadd.f32 %v1616, %v1736
  %v1738 = vpop.f32.mrb[0].mxu0
  %v1739 = vpop.f32.mrb[0].mxu0
  %v1740 = vadd.f32 %v1619, %v1739
  %v1741 = vpop.f32.mrb[0].mxu0
  %1742 = vdwg.mxu0
  %v1743 = vld [vmem:[#allocation2 + $0x20] sm:$0x1f]
  %v1745 = vshrl.u32 %v1530, 16
  %v1747 = vrot.slane %v1745, 4
  %v1748 = vshll.u32 %v1530, 16
  %v1750 = vrot.slane %v1748, 5
  %v1751 = vor.u32 %v1747, %v1750
  %v1752 = vrot.slane %v1631, 4
  %v1753 = vrot.slane %v1634, 5
  %v1754 = vor.u32 %v1752, %v1753
  %v1755 = vsel %vm351, %v1751, %v1754
  %v1756 = vrot.slane %v1640, 4
  %v1757 = vrot.slane %v1643, 5
  %v1758 = vor.u32 %v1756, %v1757
  %v1759 = vsel %vm351, %v1754, %v1758
  %v1760 = vrot.slane %v1649, 4
  %v1761 = vrot.slane %v1652, 5
  %v1762 = vor.u32 %v1760, %v1761
  %v1763 = vsel %vm351, %v1758, %v1762
  %v1765 = vshrl.u32 %v1743, 16
  %v1767 = vrot.slane %v1765, 4
  %v1768 = vshll.u32 %v1743, 16
  %v1770 = vrot.slane %v1768, 5
  %v1771 = vor.u32 %v1767, %v1770
  %v1772 = vsel %vm351, %v1762, %v1771
  %v1774 = vsel %vm41, %v1755, 0
  %v1777 = vsel %vm41, %v1759, 0
  %v1780 = vsel %vm41, %v1763, 0
  %v1783 = vsel %vm41, %v1772, 0
  %1785 = vmatprep.subr.bf16.mxu0 0
  %1786 = vmatpush1.bf16.msra.mxu0 %v1403
  %1787 = vmatprep.subr.bf16.mxu0 0
  %1788 = vmatpush1.bf16.msra.mxu0 %v1404
  %1789 = vmatprep.subr.bf16.mxu0 0
  %1790 = vmatpush1.bf16.msra.mxu0 %v1405
  %1791 = vmatprep.subr.bf16.mxu0 0
  %1792 = vmatpush1.bf16.msra.mxu0 %v1406
  %1793 = vmatprep.subr.bf16.mxu0 0
  %1794 = vmatpush1.bf16.msra.mxu0 0
  %1795 = vmatprep.subr.bf16.mxu0 0
  %1796 = vmatpush1.bf16.msra.mxu0 0
  %1797 = vmatprep.subr.bf16.mxu0 0
  %1798 = vmatpush1.bf16.msra.mxu0 0
  %1799 = vmatprep.subr.bf16.mxu0 0
  %1800 = vmatpush1.bf16.msra.mxu0 0
  %1801 = vmatprep.subr.bf16.mxu0 0
  %1802 = vmatpush1.bf16.msra.mxu0 0
  %1803 = vmatprep.subr.bf16.mxu0 0
  %1804 = vmatpush1.bf16.msra.mxu0 0
  %1805 = vmatprep.subr.bf16.mxu0 0
  %1806 = vmatpush1.bf16.msra.mxu0 0
  %1807 = vmatprep.subr.bf16.mxu0 0
  %1808 = vmatpush1.bf16.msra.mxu0 0
  %1809 = vmatprep.subr.bf16.mxu0 0
  %1810 = vmatpush1.bf16.msra.mxu0 0
  %1811 = vmatprep.subr.bf16.mxu0 0
  %1812 = vmatpush1.bf16.msra.mxu0 0
  %1813 = vmatprep.subr.bf16.mxu0 0
  %1814 = vmatpush1.bf16.msra.mxu0 0
  %1815 = vmatprep.subr.bf16.mxu0 0
  %1816 = vmatpush1.bf16.msra.mxu0 0
  %1817 = vmatprep.mubr.bf16.mxu0 0
  %1818 = vmatmul.mubr.bf16.gmra.mrb[0].mxu0 %v1774
  %v1819 = vpop.f32.mrb[0].mxu0
  %v1820 = vadd.f32 0.0, %v1819
  %v1821 = vpop.f32.mrb[0].mxu0
  %v1822 = vpop.f32.mrb[0].mxu0
  %v1823 = vadd.f32 0.0, %v1822
  %v1824 = vpop.f32.mrb[0].mxu0
  %1825 = vmatprep.mubr.bf16.mxu0 0
  %1826 = vmatmul.mubr.bf16.gmra.mrb[0].mxu0 %v1777
  %v1827 = vpop.f32.mrb[0].mxu0
  %v1828 = vadd.f32 0.0, %v1827
  %v1829 = vpop.f32.mrb[0].mxu0
  %v1830 = vpop.f32.mrb[0].mxu0
  %v1831 = vadd.f32 0.0, %v1830
  %v1832 = vpop.f32.mrb[0].mxu0
  %1833 = vmatprep.mubr.bf16.mxu0 0
  %1834 = vmatmul.mubr.bf16.gmra.mrb[0].mxu0 %v1780
  %v1835 = vpop.f32.mrb[0].mxu0
  %v1836 = vadd.f32 0.0, %v1835
  %v1837 = vpop.f32.mrb[0].mxu0
  %v1838 = vpop.f32.mrb[0].mxu0
  %v1839 = vadd.f32 0.0, %v1838
  %v1840 = vpop.f32.mrb[0].mxu0
  %1841 = vmatprep.mubr.bf16.mxu0 0
  %1842 = vmatmul.mubr.bf16.gmra.mrb[0].mxu0 %v1783
  %v1843 = vpop.f32.mrb[0].mxu0
  %v1844 = vadd.f32 0.0, %v1843
  %v1845 = vpop.f32.mrb[0].mxu0
  %v1846 = vpop.f32.mrb[0].mxu0
  %v1847 = vadd.f32 0.0, %v1846
  %v1848 = vpop.f32.mrb[0].mxu0
  %1849 = vdwg.mxu0
  %v1850 = vadd.f32 %v1713, %v1820
  %v1851 = vadd.f32 %v1716, %v1823
  %v1852 = vadd.f32 %v1721, %v1828
  %v1853 = vadd.f32 %v1724, %v1831
  %v1854 = vadd.f32 %v1729, %v1836
  %v1855 = vadd.f32 %v1732, %v1839
  %v1856 = vadd.f32 %v1737, %v1844
  %v1857 = vadd.f32 %v1740, %v1847
  %1858 = vst.msk [vmem:[#allocation3 + $0x40] sm:$0xff] %vm41, %v1850
  %1859 = vst.msk [vmem:[#allocation3 + $0x48] sm:$0xff] %vm41, %v1851
  %1860 = vst.msk [vmem:[#allocation3 + $0x50] sm:$0xff] %vm41, %v1852
  %1861 = vst.msk [vmem:[#allocation3 + $0x58] sm:$0xff] %vm41, %v1853
  %1862 = vst.msk [vmem:[#allocation3 + $0x60] sm:$0xff] %vm41, %v1854
  %1863 = vst.msk [vmem:[#allocation3 + $0x68] sm:$0xff] %vm41, %v1855
  %1864 = vst.msk [vmem:[#allocation3 + $0x70] sm:$0xff] %vm41, %v1856
  %1865 = vst.msk [vmem:[#allocation3 + $0x78] sm:$0xff] %vm41, %v1857
  %v1866 = vld [vmem:[#allocation3] sm:$0xff]
  %v1867 = vld [vmem:[#allocation3 + $0x8] sm:$0xff]
  %v1868 = vld [vmem:[#allocation3 + $0x10] sm:$0xff]
  %v1869 = vld [vmem:[#allocation3 + $0x18] sm:$0xff]
  %v1870 = vld [vmem:[#allocation3 + $0x20] sm:$0xff]
  %v1871 = vld [vmem:[#allocation3 + $0x28] sm:$0xff]
  %v1872 = vld [vmem:[#allocation3 + $0x30] sm:$0xff]
  %v1873 = vld [vmem:[#allocation3 + $0x38] sm:$0xff]
  %v1874 = vld [vmem:[#allocation3 + $0x40] sm:$0xff]
  %v1875 = vld [vmem:[#allocation3 + $0x48] sm:$0xff]
  %v1876 = vld [vmem:[#allocation3 + $0x50] sm:$0xff]
  %v1877 = vld [vmem:[#allocation3 + $0x58] sm:$0xff]
  %v1878 = vld [vmem:[#allocation3 + $0x60] sm:$0xff]
  %v1879 = vld [vmem:[#allocation3 + $0x68] sm:$0xff]
  %v1880 = vld [vmem:[#allocation3 + $0x70] sm:$0xff]
  %v1881 = vld [vmem:[#allocation3 + $0x78] sm:$0xff]
  %v1882 = vsel %vm41, %v1866, 0.0
  %v1883 = vsel %vm41, %v1867, 0.0
  %v1884 = vadd.f32 %v1882, %v1883
  %v1885 = vsel %vm41, %v1868, 0.0
  %v1886 = vadd.f32 %v1884, %v1885
  %v1887 = vsel %vm41, %v1869, 0.0
  %v1888 = vadd.f32 %v1886, %v1887
  %v1889 = vsel %vm41, %v1870, 0.0
  %v1890 = vadd.f32 %v1888, %v1889
  %v1891 = vsel %vm41, %v1871, 0.0
  %v1892 = vadd.f32 %v1890, %v1891
  %v1893 = vsel %vm41, %v1872, 0.0
  %v1894 = vadd.f32 %v1892, %v1893
  %v1895 = vsel %vm41, %v1873, 0.0
  %v1896 = vadd.f32 %v1894, %v1895
  %v1897 = vsel %vm41, %v1874, 0.0
  %v1898 = vadd.f32 %v1896, %v1897
  %v1899 = vsel %vm41, %v1875, 0.0
  %v1900 = vadd.f32 %v1898, %v1899
  %v1901 = vsel %vm41, %v1876, 0.0
  %v1902 = vadd.f32 %v1900, %v1901
  %v1903 = vsel %vm41, %v1877, 0.0
  %v1904 = vadd.f32 %v1902, %v1903
  %v1905 = vsel %vm41, %v1878, 0.0
  %v1906 = vadd.f32 %v1904, %v1905
  %v1907 = vsel %vm41, %v1879, 0.0
  %v1908 = vadd.f32 %v1906, %v1907
  %v1909 = vsel %vm41, %v1880, 0.0
  %v1910 = vadd.f32 %v1908, %v1909
  %v1911 = vsel %vm41, %v1881, 0.0
  %v1912 = vadd.f32 %v1910, %v1911
  %v1913 = vrot.slane %v1912, 4
  %v1914 = vadd.f32 %v1912, %v1913
  %v1915 = vrot.slane %v1914, 2
  %v1916 = vadd.f32 %v1914, %v1915
  %v1917 = vrot.slane %v1916, 1
  %v1918 = vadd.f32 %v1916, %v1917
  %v1919 = vmul.f32 %v1918, %v925
  %v1920 = vsub.f32 %v1866, %v1919
  %v1921 = vsub.f32 %v1867, %v1919
  %v1922 = vsub.f32 %v1868, %v1919
  %v1923 = vsub.f32 %v1869, %v1919
  %v1924 = vsub.f32 %v1870, %v1919
  %v1925 = vsub.f32 %v1871, %v1919
  %v1926 = vsub.f32 %v1872, %v1919
  %v1927 = vsub.f32 %v1873, %v1919
  %v1928 = vsub.f32 %v1874, %v1919
  %v1929 = vsub.f32 %v1875, %v1919
  %v1930 = vsub.f32 %v1876, %v1919
  %v1931 = vsub.f32 %v1877, %v1919
  %v1932 = vsub.f32 %v1878, %v1919
  %v1933 = vsub.f32 %v1879, %v1919
  %v1934 = vsub.f32 %v1880, %v1919
  %v1935 = vsub.f32 %v1881, %v1919
  %v1936 = vmul.f32 %v1920, %v1920
  %v1937 = vmul.f32 %v1921, %v1921
  %v1938 = vmul.f32 %v1922, %v1922
  %v1939 = vmul.f32 %v1923, %v1923
  %v1940 = vmul.f32 %v1924, %v1924
  %v1941 = vmul.f32 %v1925, %v1925
  %v1942 = vmul.f32 %v1926, %v1926
  %v1943 = vmul.f32 %v1927, %v1927
  %v1944 = vmul.f32 %v1928, %v1928
  %v1945 = vmul.f32 %v1929, %v1929
  %v1946 = vmul.f32 %v1930, %v1930
  %v1947 = vmul.f32 %v1931, %v1931
  %v1948 = vmul.f32 %v1932, %v1932
  %v1949 = vmul.f32 %v1933, %v1933
  %v1950 = vmul.f32 %v1934, %v1934
  %v1951 = vmul.f32 %v1935, %v1935
  %v1952 = vsel %vm41, %v1936, 0.0
  %v1953 = vsel %vm41, %v1937, 0.0
  %v1954 = vadd.f32 %v1952, %v1953
  %v1955 = vsel %vm41, %v1938, 0.0
  %v1956 = vadd.f32 %v1954, %v1955
  %v1957 = vsel %vm41, %v1939, 0.0
  %v1958 = vadd.f32 %v1956, %v1957
  %v1959 = vsel %vm41, %v1940, 0.0
  %v1960 = vadd.f32 %v1958, %v1959
  %v1961 = vsel %vm41, %v1941, 0.0
  %v1962 = vadd.f32 %v1960, %v1961
  %v1963 = vsel %vm41, %v1942, 0.0
  %v1964 = vadd.f32 %v1962, %v1963
  %v1965 = vsel %vm41, %v1943, 0.0
  %v1966 = vadd.f32 %v1964, %v1965
  %v1967 = vsel %vm41, %v1944, 0.0
  %v1968 = vadd.f32 %v1966, %v1967
  %v1969 = vsel %vm41, %v1945, 0.0
  %v1970 = vadd.f32 %v1968, %v1969
  %v1971 = vsel %vm41, %v1946, 0.0
  %v1972 = vadd.f32 %v1970, %v1971
  %v1973 = vsel %vm41, %v1947, 0.0
  %v1974 = vadd.f32 %v1972, %v1973
  %v1975 = vsel %vm41, %v1948, 0.0
  %v1976 = vadd.f32 %v1974, %v1975
  %v1977 = vsel %vm41, %v1949, 0.0
  %v1978 = vadd.f32 %v1976, %v1977
  %v1979 = vsel %vm41, %v1950, 0.0
  %v1980 = vadd.f32 %v1978, %v1979
  %v1981 = vsel %vm41, %v1951, 0.0
  %v1982 = vadd.f32 %v1980, %v1981
  %v1983 = vrot.slane %v1982, 4
  %v1984 = vadd.f32 %v1982, %v1983
  %v1985 = vrot.slane %v1984, 2
  %v1986 = vadd.f32 %v1984, %v1985
  %v1987 = vrot.slane %v1986, 1
  %v1988 = vadd.f32 %v1986, %v1987
  %v1989 = vmul.f32 %v1988, %v925
  %v1990 = vadd.f32 %v1989, 1e-05
  %v1991 = vrsqrt.pop %v1990
  %v1992 = vmul.f32 %v1920, %v1991
  %v1993 = vmul.f32 %v1921, %v1991
  %v1994 = vmul.f32 %v1922, %v1991
  %v1995 = vmul.f32 %v1923, %v1991
  %v1996 = vmul.f32 %v1924, %v1991
  %v1997 = vmul.f32 %v1925, %v1991
  %v1998 = vmul.f32 %v1926, %v1991
  %v1999 = vmul.f32 %v1927, %v1991
  %v2000 = vmul.f32 %v1928, %v1991
  %v2001 = vmul.f32 %v1929, %v1991
  %v2002 = vmul.f32 %v1930, %v1991
  %v2003 = vmul.f32 %v1931, %v1991
  %v2004 = vmul.f32 %v1932, %v1991
  %v2005 = vmul.f32 %v1933, %v1991
  %v2006 = vmul.f32 %v1934, %v1991
  %v2007 = vmul.f32 %v1935, %v1991
  %v2008 = vld [vmem:[%s0] sm:$0xff]
  %v2009 = vld [vmem:[%s0 + $0x8] sm:$0xff]
  %v2010 = vld [vmem:[%s0 + $0x10] sm:$0xff]
  %v2011 = vld [vmem:[%s0 + $0x18] sm:$0xff]
  %v2012 = vld [vmem:[%s0 + $0x20] sm:$0xff]
  %v2013 = vld [vmem:[%s0 + $0x28] sm:$0xff]
  %v2014 = vld [vmem:[%s0 + $0x30] sm:$0xff]
  %v2015 = vld [vmem:[%s0 + $0x38] sm:$0xff]
  %v2016 = vld [vmem:[%s0 + $0x40] sm:$0xff]
  %v2017 = vld [vmem:[%s0 + $0x48] sm:$0xff]
  %v2018 = vld [vmem:[%s0 + $0x50] sm:$0xff]
  %v2019 = vld [vmem:[%s0 + $0x58] sm:$0xff]
  %v2020 = vld [vmem:[%s0 + $0x60] sm:$0xff]
  %v2021 = vld [vmem:[%s0 + $0x68] sm:$0xff]
  %v2022 = vld [vmem:[%s0 + $0x70] sm:$0xff]
  %v2023 = vld [vmem:[%s0 + $0x78] sm:$0xff]
  %v2024 = vadd.f32 %v1992, %v2008
  %v2025 = vadd.f32 %v1993, %v2009
  %v2026 = vadd.f32 %v1994, %v2010
  %v2027 = vadd.f32 %v1995, %v2011
  %v2028 = vadd.f32 %v1996, %v2012
  %v2029 = vadd.f32 %v1997, %v2013
  %v2030 = vadd.f32 %v1998, %v2014
  %v2031 = vadd.f32 %v1999, %v2015
  %v2032 = vadd.f32 %v2000, %v2016
  %v2033 = vadd.f32 %v2001, %v2017
  %v2034 = vadd.f32 %v2002, %v2018
  %v2035 = vadd.f32 %v2003, %v2019
  %v2036 = vadd.f32 %v2004, %v2020
  %v2037 = vadd.f32 %v2005, %v2021
  %v2038 = vadd.f32 %v2006, %v2022
  %v2039 = vadd.f32 %v2007, %v2023
  %v2040 = vmax.f32 %v2024, 0.0
  %v2041 = vmax.f32 %v2025, 0.0
  %v2042 = vmax.f32 %v2026, 0.0
  %v2043 = vmax.f32 %v2027, 0.0
  %v2044 = vmax.f32 %v2028, 0.0
  %v2045 = vmax.f32 %v2029, 0.0
  %v2046 = vmax.f32 %v2030, 0.0
  %v2047 = vmax.f32 %v2031, 0.0
  %v2048 = vmax.f32 %v2032, 0.0
  %v2049 = vmax.f32 %v2033, 0.0
  %v2050 = vmax.f32 %v2034, 0.0
  %v2051 = vmax.f32 %v2035, 0.0
  %v2052 = vmax.f32 %v2036, 0.0
  %v2053 = vmax.f32 %v2037, 0.0
  %v2054 = vmax.f32 %v2038, 0.0
  %v2055 = vmax.f32 %v2039, 0.0
  %2056 = vst.msk [vmem:[%s3] sm:$0xff] %vm41, %v2040
  %2057 = vst.msk [vmem:[%s3 + $0x8] sm:$0xff] %vm41, %v2041
  %2058 = vst.msk [vmem:[%s3 + $0x10] sm:$0xff] %vm41, %v2042
  %2059 = vst.msk [vmem:[%s3 + $0x18] sm:$0xff] %vm41, %v2043
  %2060 = vst.msk [vmem:[%s3 + $0x20] sm:$0xff] %vm41, %v2044
  %2061 = vst.msk [vmem:[%s3 + $0x28] sm:$0xff] %vm41, %v2045
  %2062 = vst.msk [vmem:[%s3 + $0x30] sm:$0xff] %vm41, %v2046
  %2063 = vst.msk [vmem:[%s3 + $0x38] sm:$0xff] %vm41, %v2047
  %2064 = vst.msk [vmem:[%s3 + $0x40] sm:$0xff] %vm41, %v2048
  %2065 = vst.msk [vmem:[%s3 + $0x48] sm:$0xff] %vm41, %v2049
  %2066 = vst.msk [vmem:[%s3 + $0x50] sm:$0xff] %vm41, %v2050
  %2067 = vst.msk [vmem:[%s3 + $0x58] sm:$0xff] %vm41, %v2051
  %2068 = vst.msk [vmem:[%s3 + $0x60] sm:$0xff] %vm41, %v2052
  %2069 = vst.msk [vmem:[%s3 + $0x68] sm:$0xff] %vm41, %v2053
  %2070 = vst.msk [vmem:[%s3 + $0x70] sm:$0xff] %vm41, %v2054
  %2071 = vst.msk [vmem:[%s3 + $0x78] sm:$0xff] %vm41, %v2055
  // Predicated region
  $region14: #{encoder_block_forward.1} parent=0 // pred_check
    _
  $region15: #{encoder_block_forward.1} parent=0 // pred_check_branch
    %2073 = sbr.rel (0) target = $region17
  $region16: #{encoder_block_forward.1} parent=0 // pred_region
    _
  $region17: #{encoder_block_forward.1} parent=0 // pred_fallthru
    _
  // Predicated region
  $region18: #{encoder_block_forward.1} parent=0 // pred_check
    _
  $region19: #{encoder_block_forward.1} parent=0 // pred_check_branch
    %2075 = sbr.rel (0) target = $region21
  $region20: #{encoder_block_forward.1} parent=0 // pred_region
    _
  $region21: #{encoder_block_forward.1} parent=0 // pred_fallthru
    _

</llo_original>
